<compile_context>
chip_gen: v7x
topology: tpu7x:2x2x1
jax: 0.10.0
libtpu: 0.0.40
codegen_flags: <defaults>
</compile_context>

<pallas_src>
import jax
import jax.numpy as jnp
from jax.experimental import pallas as pl
from jax.experimental.pallas import tpu as pltpu


def _round_up(x, m):
    return ((x + m - 1) // m) * m


def _cdiv(a, b):
    return (a + b - 1) // b


def _pad2(a, rows, cols):
    pr, pc = rows - a.shape[0], cols - a.shape[1]
    if pr == 0 and pc == 0:
        return a
    return jnp.pad(a, ((0, pr), (0, pc)))


def _mxu_lane_multiple():
    """256 on 256-wide-MXU chips (v6e/v7x), 128 on v2-v5e.  Pure-Python, trace-time query."""
    try:
        kind = jax.devices()[0].device_kind.lower()
    except Exception:
        return 128
    if any(t in kind for t in ("v2", "v3", "v4", "v5")):
        return 128
    return 256


def _make_value_net_kernel(state_dim, use_vpu_layer1):
    def kernel(x_ref, w1_ref, b1_ref, w2_ref, b2_ref, w3_ref, b3_ref, o_ref):
        wdtype = w2_ref.dtype
        x = x_ref[...]                                       # (tile_b, S), caller dtype

        # ---- Layer 1 ----
        if use_vpu_layer1:
            # K = state_dim is tiny: S rank-1 VPU FMAs instead of a nearly-empty MXU K-pass.
            h1 = x[:, 0:1].astype(jnp.float32) * w1_ref[0:1, :].astype(jnp.float32)
            for k in range(1, state_dim):
                h1 = h1 + x[:, k:k + 1].astype(jnp.float32) * w1_ref[k:k + 1, :].astype(jnp.float32)
        else:
            # In-kernel cast of the streamed activations (no host-side astype pass).
            h1 = jnp.dot(x.astype(wdtype), w1_ref[...], preferred_element_type=jnp.float32)
        h1 = jnp.maximum(h1 + b1_ref[...].astype(jnp.float32), 0.0).astype(wdtype)

        # ---- Layer 2 (MXU, f32 accumulation) ----
        h2 = jnp.dot(h1, w2_ref[...], preferred_element_type=jnp.float32)
        h2 = jnp.maximum(h2 + b2_ref[...].astype(jnp.float32), 0.0)
        # TODO(synk): on v6e/v7x h2 could be cast to bf16 here to halve the live head
        # intermediate; kept f32 for v5e (no bf16 VPU) and precision margin.

        # ---- Head (out_features = 1): VPU multiply + XLU lane reduce, MXU stays free ----
        v = jnp.sum(h2 * w3_ref[...].astype(jnp.float32), axis=-1, keepdims=True)
        o_ref[...] = (v + b3_ref[...].astype(jnp.float32)).astype(o_ref.dtype)

    return kernel


def value_network_forward(state, params, *, tile_b=1024, vmem_limit_bytes=None,
                          single_buffer_weights=True):
    """state: (B, state_dim), any float dtype (cast to the param dtype inside the kernel).
    params: weights stored transposed (in, out); biases (1, H); w3 as (1, H); b3 (1, 1)."""
    B, S = state.shape
    H = params["w1"].shape[1]
    wdtype = params["w1"].dtype

    # Hidden dim padded to the MXU-native lane width (256 on v6e/v7x only when it pays off).
    lane_mult = 256 if (_mxu_lane_multiple() == 256 and H > 256) else 128
    H_pad = _round_up(H, lane_mult)

    # Batch tile: multiple of 8, as big as requested (per-grid-step overhead dominates for
    # small tiles), but clamped to leave >= 2 grid steps for v7x megacore sharding.
    tile_b = max(8, min(_round_up(tile_b, 8), _round_up(_cdiv(B, 2), 8)))
    num_steps = _cdiv(B, tile_b)      # ragged last tile: garbage rows never reach the output

    # One-time zero-padding of the (small) parameters only; zero pads are bit-exact
    # (ReLU(0)=0, padded w/b columns contribute nothing).  The activation stream is NOT
    # padded or copied on the host.
    w1 = _pad2(params["w1"], S, H_pad)
    b1 = _pad2(params["b1"], 1, H_pad)
    w2 = _pad2(params["w2"], H_pad, H_pad)
    b2 = _pad2(params["b2"], 1, H_pad)
    w3 = _pad2(params["w3"], 1, H_pad)
    b3 = params["b3"]

    use_vpu_layer1 = S <= 16
    kernel = _make_value_net_kernel(S, use_vpu_layer1)

    # Constant-index_map operands are DMA'd once and stay VMEM-resident; single-buffer them.
    n_wbuf = 1 if single_buffer_weights else 2

    def const_spec(shape):
        kwargs = {"pipeline_mode": pl.Buffered(1)} if single_buffer_weights else {}
        return pl.BlockSpec(shape, lambda i: (0, 0), **kwargs)

    # VMEM budget from the actual block footprint (weights x n_wbuf, streamed x/out x2 buffers,
    # plus f32 intermediate headroom), clamped to stay inside v7x's 64 MiB physical VMEM.
    if vmem_limit_bytes is None:
        wbytes = (S * H_pad + H_pad * H_pad + 3 * H_pad + 8) * jnp.dtype(wdtype).itemsize * n_wbuf
        xbytes = tile_b * S * jnp.dtype(state.dtype).itemsize * 2
        obytes = tile_b * 4 * 2
        interm = 3 * tile_b * H_pad * 4
        vmem_limit_bytes = min(
            max(int(1.3 * (wbytes + xbytes + obytes + interm)) + (4 << 20), 16 << 20),
            56 << 20)

    out = pl.pallas_call(
        kernel,
        out_shape=jax.ShapeDtypeStruct((B, 1), jnp.float32),
        grid=(num_steps,),
        in_specs=[
            pl.BlockSpec((tile_b, S), lambda i: (i, 0)),   # streamed activations, no host pad/cast
            const_spec((S, H_pad)),                        # VMEM-resident weights / biases
            const_spec((1, H_pad)),
            const_spec((H_pad, H_pad)),
            const_spec((1, H_pad)),
            const_spec((1, H_pad)),
            const_spec((1, 1)),
        ],
        out_specs=pl.BlockSpec((tile_b, 1), lambda i: (i, 0)),
        compiler_params=pltpu.CompilerParams(
            dimension_semantics=("parallel",),             # megacore on v7x, no-op elsewhere
            vmem_limit_bytes=vmem_limit_bytes,
        ),
    )(state, w1, b1, w2, b2, w3, b3)
    # TODO(synk): a lane-dense (8, tile_b//8) output slab would avoid 1-lane masked stores;
    # skipped since output bytes are negligible next to the streamed input here.

    return out


def init_params(key, state_dim, hidden_dim, init_w=0.003, dtype=jnp.bfloat16):
    """Matches the PyTorch module's shapes / init scheme (uniform +-1/sqrt(fan_in), head +-init_w).
    Weights stored transposed (in, out); w3 stored as a (1, hidden) row for the VPU head.
    bf16 is the default (MXU-native on v5e/v6e/v7x); matmuls still accumulate in f32."""
    k1, k2, k3, k4, k5, k6 = jax.random.split(key, 6)

    def uni(k, shape, bound):
        return jax.random.uniform(k, shape, jnp.float32, -bound, bound).astype(dtype)

    b1_bound = 1.0 / (state_dim ** 0.5)
    b2_bound = 1.0 / (hidden_dim ** 0.5)
    return {
        "w1": uni(k1, (state_dim, hidden_dim), b1_bound),
        "b1": uni(k2, (1, hidden_dim), b1_bound),
        "w2": uni(k3, (hidden_dim, hidden_dim), b2_bound),
        "b2": uni(k4, (1, hidden_dim), b2_bound),
        "w3": uni(k5, (1, hidden_dim), init_w),
        "b3": uni(k6, (1, 1), init_w),
    }


if __name__ == "__main__":
    batch = 24          # > tile_b after the >=2-step clamp -> exercises the ragged last tile
    state_dim = 4
    hidden_dim = 32

    key = jax.random.PRNGKey(0)
    pkey, xkey = jax.random.split(key)

    params = init_params(pkey, state_dim, hidden_dim)        # bf16 by default
    state = jax.random.normal(xkey, (batch, state_dim), jnp.float32)

    try:
        out = jax.block_until_ready(value_network_forward(state, params))
    except Exception:
        # Fallback for toolchains that reject single-buffered (Buffered(1)) operands.
        out = jax.block_until_ready(
            value_network_forward(state, params, single_buffer_weights=False))

    # Reference check in plain JAX (same math as the PyTorch forward), f32.
    p32 = {k: v.astype(jnp.float32) for k, v in params.items()}
    h = jnp.maximum(state @ p32["w1"] + p32["b1"], 0.0)
    h = jnp.maximum(h @ p32["w2"] + p32["b2"], 0.0)
    ref = h @ p32["w3"].T + p32["b3"]

    atol = 1e-5 if params["w1"].dtype == jnp.float32 else 1e-2   # dtype-dependent tolerance
    assert out.shape == (batch, 1)
    assert jnp.allclose(out, ref, atol=atol), "mismatch vs reference"

    print("KERNEL_OK")
</pallas_src>

<mosaic_0001>
module attributes {stable_mosaic.version = 11 : i64} {
  func.func @kernel(%arg0: i32, %arg1: memref<16x4xf32, #tpu.memory_space<vmem>>, %arg2: memref<4x128xbf16, #tpu.memory_space<vmem>>, %arg3: memref<1x128xbf16, #tpu.memory_space<vmem>>, %arg4: memref<128x128xbf16, #tpu.memory_space<vmem>>, %arg5: memref<1x128xbf16, #tpu.memory_space<vmem>>, %arg6: memref<1x128xbf16, #tpu.memory_space<vmem>>, %arg7: memref<1x1xbf16, #tpu.memory_space<vmem>>, %arg8: memref<16x1xf32, #tpu.memory_space<vmem>>) attributes {dimension_semantics = [#tpu.dimension_semantics<parallel>], iteration_bounds = array<i64: 2>, scalar_prefetch = 0 : i64, scratch_operands = 0 : i64, tpu.core_type = #tpu.core_type<tc>, window_params = [{transform_indices = @transform_0, window_bounds = array<i64: 16, 4>}, {pipeline_mode = #tpu.pipeline_mode<synchronous>, transform_indices = @transform_1, window_bounds = array<i64: 4, 128>}, {pipeline_mode = #tpu.pipeline_mode<synchronous>, transform_indices = @transform_2, window_bounds = array<i64: 1, 128>}, {pipeline_mode = #tpu.pipeline_mode<synchronous>, transform_indices = @transform_3, window_bounds = array<i64: 128, 128>}, {pipeline_mode = #tpu.pipeline_mode<synchronous>, transform_indices = @transform_4, window_bounds = array<i64: 1, 128>}, {pipeline_mode = #tpu.pipeline_mode<synchronous>, transform_indices = @transform_5, window_bounds = array<i64: 1, 128>}, {pipeline_mode = #tpu.pipeline_mode<synchronous>, transform_indices = @transform_6, window_bounds = array<i64: 1, 1>}, {transform_indices = @transform_7, window_bounds = array<i64: 16, 1>}]} {
    %c0 = arith.constant 0 : index
    %c0_0 = arith.constant 0 : index
    %0 = vector.load %arg1[%c0, %c0_0] : memref<16x4xf32, #tpu.memory_space<vmem>>, vector<16x4xf32>
    %1 = vector.extract_strided_slice %0 {offsets = [0, 0], sizes = [16, 1], strides = [1, 1]} : vector<16x4xf32> to vector<16x1xf32>
    %c0_1 = arith.constant 0 : index
    %c0_2 = arith.constant 0 : index
    %2 = vector.load %arg2[%c0_1, %c0_2] : memref<4x128xbf16, #tpu.memory_space<vmem>>, vector<1x128xbf16>
    %3 = arith.extf %2 : vector<1x128xbf16> to vector<1x128xf32>
    %4 = vector.broadcast %1 : vector<16x1xf32> to vector<16x128xf32>
    %5 = vector.broadcast %3 : vector<1x128xf32> to vector<16x128xf32>
    %6 = arith.mulf %4, %5 : vector<16x128xf32>
    %7 = vector.extract_strided_slice %0 {offsets = [0, 1], sizes = [16, 1], strides = [1, 1]} : vector<16x4xf32> to vector<16x1xf32>
    %c1 = arith.constant 1 : index
    %c0_3 = arith.constant 0 : index
    %8 = vector.load %arg2[%c1, %c0_3] : memref<4x128xbf16, #tpu.memory_space<vmem>>, vector<1x128xbf16>
    %9 = arith.extf %8 : vector<1x128xbf16> to vector<1x128xf32>
    %10 = vector.broadcast %7 : vector<16x1xf32> to vector<16x128xf32>
    %11 = vector.broadcast %9 : vector<1x128xf32> to vector<16x128xf32>
    %12 = arith.mulf %10, %11 : vector<16x128xf32>
    %13 = arith.addf %6, %12 : vector<16x128xf32>
    %14 = vector.extract_strided_slice %0 {offsets = [0, 2], sizes = [16, 1], strides = [1, 1]} : vector<16x4xf32> to vector<16x1xf32>
    %c2 = arith.constant 2 : index
    %c0_4 = arith.constant 0 : index
    %15 = vector.load %arg2[%c2, %c0_4] : memref<4x128xbf16, #tpu.memory_space<vmem>>, vector<1x128xbf16>
    %16 = arith.extf %15 : vector<1x128xbf16> to vector<1x128xf32>
    %17 = vector.broadcast %14 : vector<16x1xf32> to vector<16x128xf32>
    %18 = vector.broadcast %16 : vector<1x128xf32> to vector<16x128xf32>
    %19 = arith.mulf %17, %18 : vector<16x128xf32>
    %20 = arith.addf %13, %19 : vector<16x128xf32>
    %21 = vector.extract_strided_slice %0 {offsets = [0, 3], sizes = [16, 1], strides = [1, 1]} : vector<16x4xf32> to vector<16x1xf32>
    %c3 = arith.constant 3 : index
    %c0_5 = arith.constant 0 : index
    %22 = vector.load %arg2[%c3, %c0_5] : memref<4x128xbf16, #tpu.memory_space<vmem>>, vector<1x128xbf16>
    %23 = arith.extf %22 : vector<1x128xbf16> to vector<1x128xf32>
    %24 = vector.broadcast %21 : vector<16x1xf32> to vector<16x128xf32>
    %25 = vector.broadcast %23 : vector<1x128xf32> to vector<16x128xf32>
    %26 = arith.mulf %24, %25 : vector<16x128xf32>
    %27 = arith.addf %20, %26 : vector<16x128xf32>
    %c0_6 = arith.constant 0 : index
    %c0_7 = arith.constant 0 : index
    %28 = vector.load %arg3[%c0_6, %c0_7] : memref<1x128xbf16, #tpu.memory_space<vmem>>, vector<1x128xbf16>
    %29 = arith.extf %28 : vector<1x128xbf16> to vector<1x128xf32>
    %30 = vector.broadcast %29 : vector<1x128xf32> to vector<16x128xf32>
    %31 = arith.addf %27, %30 : vector<16x128xf32>
    %cst = arith.constant 0.000000e+00 : f32
    %32 = vector.broadcast %cst : f32 to vector<16x128xf32>
    %33 = arith.maximumf %31, %32 : vector<16x128xf32>
    %34 = arith.truncf %33 : vector<16x128xf32> to vector<16x128xbf16>
    %c0_8 = arith.constant 0 : index
    %c0_9 = arith.constant 0 : index
    %35 = vector.load %arg4[%c0_8, %c0_9] : memref<128x128xbf16, #tpu.memory_space<vmem>>, vector<128x128xbf16>
    %cst_10 = arith.constant dense<0.000000e+00> : vector<16x128xf32>
    %36 = tpu.matmul %34, %35, %cst_10 {dimension_numbers = #tpu.dot_dimension_numbers<[1], [0], [0], [1], [0, 0, 1, 1], [], []>} : vector<16x128xbf16>, vector<128x128xbf16>, vector<16x128xf32> -> vector<16x128xf32>
    %c0_11 = arith.constant 0 : index
    %c0_12 = arith.constant 0 : index
    %37 = vector.load %arg5[%c0_11, %c0_12] : memref<1x128xbf16, #tpu.memory_space<vmem>>, vector<1x128xbf16>
    %38 = arith.extf %37 : vector<1x128xbf16> to vector<1x128xf32>
    %39 = vector.broadcast %38 : vector<1x128xf32> to vector<16x128xf32>
    %40 = arith.addf %36, %39 : vector<16x128xf32>
    %cst_13 = arith.constant 0.000000e+00 : f32
    %41 = vector.broadcast %cst_13 : f32 to vector<16x128xf32>
    %42 = arith.maximumf %40, %41 : vector<16x128xf32>
    %c0_14 = arith.constant 0 : index
    %c0_15 = arith.constant 0 : index
    %43 = vector.load %arg6[%c0_14, %c0_15] : memref<1x128xbf16, #tpu.memory_space<vmem>>, vector<1x128xbf16>
    %44 = arith.extf %43 : vector<1x128xbf16> to vector<1x128xf32>
    %45 = vector.broadcast %44 : vector<1x128xf32> to vector<16x128xf32>
    %46 = arith.mulf %42, %45 : vector<16x128xf32>
    %cst_16 = arith.constant dense<0.000000e+00> : vector<16xf32>
    %47 = vector.multi_reduction <add>, %46, %cst_16 [1] : vector<16x128xf32> to vector<16xf32>
    %48 = vector.shape_cast %47 : vector<16xf32> to vector<16x1xf32>
    %c0_17 = arith.constant 0 : index
    %c0_18 = arith.constant 0 : index
    %49 = vector.load %arg7[%c0_17, %c0_18] : memref<1x1xbf16, #tpu.memory_space<vmem>>, vector<1x1xbf16>
    %50 = arith.extf %49 : vector<1x1xbf16> to vector<1x1xf32>
    %51 = vector.broadcast %50 : vector<1x1xf32> to vector<16x1xf32>
    %52 = arith.addf %48, %51 : vector<16x1xf32>
    %c0_19 = arith.constant 0 : index
    %c0_20 = arith.constant 0 : index
    %53 = vector.load %arg8[%c0_19, %c0_20] : memref<16x1xf32, #tpu.memory_space<vmem>>, vector<16x1xf32>
    tpu.vector_store %arg8[%c0_19, %c0_20], %52 {strides = array<i32>} : memref<16x1xf32, #tpu.memory_space<vmem>>, vector<16x1xf32>,
    return
  }
  func.func @transform_0(%arg0: i32) -> (i32, i32) {
    %c0_i32 = arith.constant 0 : i32
    %c0_i32_0 = arith.constant 0 : i32
    return %arg0, %c0_i32 : i32, i32
  }
  func.func @transform_1(%arg0: i32) -> (i32, i32) {
    %c0_i32 = arith.constant 0 : i32
    %c0_i32_0 = arith.constant 0 : i32
    %c0_i32_1 = arith.constant 0 : i32
    return %c0_i32, %c0_i32_0 : i32, i32
  }
  func.func @transform_2(%arg0: i32) -> (i32, i32) {
    %c0_i32 = arith.constant 0 : i32
    %c0_i32_0 = arith.constant 0 : i32
    %c0_i32_1 = arith.constant 0 : i32
    return %c0_i32, %c0_i32_0 : i32, i32
  }
  func.func @transform_3(%arg0: i32) -> (i32, i32) {
    %c0_i32 = arith.constant 0 : i32
    %c0_i32_0 = arith.constant 0 : i32
    %c0_i32_1 = arith.constant 0 : i32
    return %c0_i32, %c0_i32_0 : i32, i32
  }
  func.func @transform_4(%arg0: i32) -> (i32, i32) {
    %c0_i32 = arith.constant 0 : i32
    %c0_i32_0 = arith.constant 0 : i32
    %c0_i32_1 = arith.constant 0 : i32
    return %c0_i32, %c0_i32_0 : i32, i32
  }
  func.func @transform_5(%arg0: i32) -> (i32, i32) {
    %c0_i32 = arith.constant 0 : i32
    %c0_i32_0 = arith.constant 0 : i32
    %c0_i32_1 = arith.constant 0 : i32
    return %c0_i32, %c0_i32_0 : i32, i32
  }
  func.func @transform_6(%arg0: i32) -> (i32, i32) {
    %c0_i32 = arith.constant 0 : i32
    %c0_i32_0 = arith.constant 0 : i32
    %c0_i32_1 = arith.constant 0 : i32
    return %c0_i32, %c0_i32_0 : i32, i32
  }
  func.func @transform_7(%arg0: i32) -> (i32, i32) {
    %c0_i32 = arith.constant 0 : i32
    %c0_i32_0 = arith.constant 0 : i32
    return %arg0, %c0_i32 : i32, i32
  }
}

module attributes {stable_mosaic.version = 11 : i64} {
  func.func @kernel(%arg0: i32, %arg1: memref<16x4xf32, #tpu.memory_space<vmem>>, %arg2: memref<4x128xbf16, #tpu.memory_space<vmem>>, %arg3: memref<1x128xbf16, #tpu.memory_space<vmem>>, %arg4: memref<128x128xbf16, #tpu.memory_space<vmem>>, %arg5: memref<1x128xbf16, #tpu.memory_space<vmem>>, %arg6: memref<1x128xbf16, #tpu.memory_space<vmem>>, %arg7: memref<1x1xbf16, #tpu.memory_space<vmem>>, %arg8: memref<16x1xf32, #tpu.memory_space<vmem>>) attributes {dimension_semantics = [#tpu.dimension_semantics<parallel>], iteration_bounds = array<i64: 2>, scalar_prefetch = 0 : i64, scratch_operands = 0 : i64, tpu.core_type = #tpu.core_type<tc>, window_params = [{transform_indices = @transform_0, window_bounds = array<i64: 16, 4>}, {pipeline_mode = #tpu.pipeline_mode<synchronous>, transform_indices = @transform_1, window_bounds = array<i64: 4, 128>}, {pipeline_mode = #tpu.pipeline_mode<synchronous>, transform_indices = @transform_2, window_bounds = array<i64: 1, 128>}, {pipeline_mode = #tpu.pipeline_mode<synchronous>, transform_indices = @transform_3, window_bounds = array<i64: 128, 128>}, {pipeline_mode = #tpu.pipeline_mode<synchronous>, transform_indices = @transform_4, window_bounds = array<i64: 1, 128>}, {pipeline_mode = #tpu.pipeline_mode<synchronous>, transform_indices = @transform_5, window_bounds = array<i64: 1, 128>}, {pipeline_mode = #tpu.pipeline_mode<synchronous>, transform_indices = @transform_6, window_bounds = array<i64: 1, 1>}, {transform_indices = @transform_7, window_bounds = array<i64: 16, 1>}]} {
    %c0 = arith.constant 0 : index
    %c0_0 = arith.constant 0 : index
    %0 = vector.load %arg1[%c0, %c0_0] : memref<16x4xf32, #tpu.memory_space<vmem>>, vector<16x4xf32>
    %1 = vector.extract_strided_slice %0 {offsets = [0, 0], sizes = [16, 1], strides = [1, 1]} : vector<16x4xf32> to vector<16x1xf32>
    %c0_1 = arith.constant 0 : index
    %c0_2 = arith.constant 0 : index
    %2 = vector.load %arg2[%c0_1, %c0_2] : memref<4x128xbf16, #tpu.memory_space<vmem>>, vector<1x128xbf16>
    %3 = arith.extf %2 : vector<1x128xbf16> to vector<1x128xf32>
    %4 = vector.broadcast %1 : vector<16x1xf32> to vector<16x128xf32>
    %5 = vector.broadcast %3 : vector<1x128xf32> to vector<16x128xf32>
    %6 = arith.mulf %4, %5 : vector<16x128xf32>
    %7 = vector.extract_strided_slice %0 {offsets = [0, 1], sizes = [16, 1], strides = [1, 1]} : vector<16x4xf32> to vector<16x1xf32>
    %c1 = arith.constant 1 : index
    %c0_3 = arith.constant 0 : index
    %8 = vector.load %arg2[%c1, %c0_3] : memref<4x128xbf16, #tpu.memory_space<vmem>>, vector<1x128xbf16>
    %9 = arith.extf %8 : vector<1x128xbf16> to vector<1x128xf32>
    %10 = vector.broadcast %7 : vector<16x1xf32> to vector<16x128xf32>
    %11 = vector.broadcast %9 : vector<1x128xf32> to vector<16x128xf32>
    %12 = arith.mulf %10, %11 : vector<16x128xf32>
    %13 = arith.addf %6, %12 : vector<16x128xf32>
    %14 = vector.extract_strided_slice %0 {offsets = [0, 2], sizes = [16, 1], strides = [1, 1]} : vector<16x4xf32> to vector<16x1xf32>
    %c2 = arith.constant 2 : index
    %c0_4 = arith.constant 0 : index
    %15 = vector.load %arg2[%c2, %c0_4] : memref<4x128xbf16, #tpu.memory_space<vmem>>, vector<1x128xbf16>
    %16 = arith.extf %15 : vector<1x128xbf16> to vector<1x128xf32>
    %17 = vector.broadcast %14 : vector<16x1xf32> to vector<16x128xf32>
    %18 = vector.broadcast %16 : vector<1x128xf32> to vector<16x128xf32>
    %19 = arith.mulf %17, %18 : vector<16x128xf32>
    %20 = arith.addf %13, %19 : vector<16x128xf32>
    %21 = vector.extract_strided_slice %0 {offsets = [0, 3], sizes = [16, 1], strides = [1, 1]} : vector<16x4xf32> to vector<16x1xf32>
    %c3 = arith.constant 3 : index
    %c0_5 = arith.constant 0 : index
    %22 = vector.load %arg2[%c3, %c0_5] : memref<4x128xbf16, #tpu.memory_space<vmem>>, vector<1x128xbf16>
    %23 = arith.extf %22 : vector<1x128xbf16> to vector<1x128xf32>
    %24 = vector.broadcast %21 : vector<16x1xf32> to vector<16x128xf32>
    %25 = vector.broadcast %23 : vector<1x128xf32> to vector<16x128xf32>
    %26 = arith.mulf %24, %25 : vector<16x128xf32>
    %27 = arith.addf %20, %26 : vector<16x128xf32>
    %c0_6 = arith.constant 0 : index
    %c0_7 = arith.constant 0 : index
    %28 = vector.load %arg3[%c0_6, %c0_7] : memref<1x128xbf16, #tpu.memory_space<vmem>>, vector<1x128xbf16>
    %29 = arith.extf %28 : vector<1x128xbf16> to vector<1x128xf32>
    %30 = vector.broadcast %29 : vector<1x128xf32> to vector<16x128xf32>
    %31 = arith.addf %27, %30 : vector<16x128xf32>
    %cst = arith.constant 0.000000e+00 : f32
    %32 = vector.broadcast %cst : f32 to vector<16x128xf32>
    %33 = arith.maximumf %31, %32 : vector<16x128xf32>
    %34 = arith.truncf %33 : vector<16x128xf32> to vector<16x128xbf16>
    %c0_8 = arith.constant 0 : index
    %c0_9 = arith.constant 0 : index
    %35 = vector.load %arg4[%c0_8, %c0_9] : memref<128x128xbf16, #tpu.memory_space<vmem>>, vector<128x128xbf16>
    %cst_10 = arith.constant dense<0.000000e+00> : vector<16x128xf32>
    %36 = tpu.matmul %34, %35, %cst_10 {dimension_numbers = #tpu.dot_dimension_numbers<[1], [0], [0], [1], [0, 0, 1, 1], [], []>} : vector<16x128xbf16>, vector<128x128xbf16>, vector<16x128xf32> -> vector<16x128xf32>
    %c0_11 = arith.constant 0 : index
    %c0_12 = arith.constant 0 : index
    %37 = vector.load %arg5[%c0_11, %c0_12] : memref<1x128xbf16, #tpu.memory_space<vmem>>, vector<1x128xbf16>
    %38 = arith.extf %37 : vector<1x128xbf16> to vector<1x128xf32>
    %39 = vector.broadcast %38 : vector<1x128xf32> to vector<16x128xf32>
    %40 = arith.addf %36, %39 : vector<16x128xf32>
    %cst_13 = arith.constant 0.000000e+00 : f32
    %41 = vector.broadcast %cst_13 : f32 to vector<16x128xf32>
    %42 = arith.maximumf %40, %41 : vector<16x128xf32>
    %c0_14 = arith.constant 0 : index
    %c0_15 = arith.constant 0 : index
    %43 = vector.load %arg6[%c0_14, %c0_15] : memref<1x128xbf16, #tpu.memory_space<vmem>>, vector<1x128xbf16>
    %44 = arith.extf %43 : vector<1x128xbf16> to vector<1x128xf32>
    %45 = vector.broadcast %44 : vector<1x128xf32> to vector<16x128xf32>
    %46 = arith.mulf %42, %45 : vector<16x128xf32>
    %cst_16 = arith.constant dense<0.000000e+00> : vector<16xf32>
    %47 = vector.multi_reduction <add>, %46, %cst_16 [1] : vector<16x128xf32> to vector<16xf32>
    %48 = vector.shape_cast %47 : vector<16xf32> to vector<16x1xf32>
    %c0_17 = arith.constant 0 : index
    %c0_18 = arith.constant 0 : index
    %49 = vector.load %arg7[%c0_17, %c0_18] : memref<1x1xbf16, #tpu.memory_space<vmem>>, vector<1x1xbf16>
    %50 = arith.extf %49 : vector<1x1xbf16> to vector<1x1xf32>
    %51 = vector.broadcast %50 : vector<1x1xf32> to vector<16x1xf32>
    %52 = arith.addf %48, %51 : vector<16x1xf32>
    %c0_19 = arith.constant 0 : index
    %c0_20 = arith.constant 0 : index
    %53 = vector.load %arg8[%c0_19, %c0_20] : memref<16x1xf32, #tpu.memory_space<vmem>>, vector<16x1xf32>
    tpu.vector_store %arg8[%c0_19, %c0_20], %52 {strides = array<i32>} : memref<16x1xf32, #tpu.memory_space<vmem>>, vector<16x1xf32>,
    return
  }
  func.func @transform_0(%arg0: i32) -> (i32, i32) {
    %c0_i32 = arith.constant 0 : i32
    %c0_i32_0 = arith.constant 0 : i32
    return %arg0, %c0_i32 : i32, i32
  }
  func.func @transform_1(%arg0: i32) -> (i32, i32) {
    %c0_i32 = arith.constant 0 : i32
    %c0_i32_0 = arith.constant 0 : i32
    %c0_i32_1 = arith.constant 0 : i32
    return %c0_i32, %c0_i32_0 : i32, i32
  }
  func.func @transform_2(%arg0: i32) -> (i32, i32) {
    %c0_i32 = arith.constant 0 : i32
    %c0_i32_0 = arith.constant 0 : i32
    %c0_i32_1 = arith.constant 0 : i32
    return %c0_i32, %c0_i32_0 : i32, i32
  }
  func.func @transform_3(%arg0: i32) -> (i32, i32) {
    %c0_i32 = arith.constant 0 : i32
    %c0_i32_0 = arith.constant 0 : i32
    %c0_i32_1 = arith.constant 0 : i32
    return %c0_i32, %c0_i32_0 : i32, i32
  }
  func.func @transform_4(%arg0: i32) -> (i32, i32) {
    %c0_i32 = arith.constant 0 : i32
    %c0_i32_0 = arith.constant 0 : i32
    %c0_i32_1 = arith.constant 0 : i32
    return %c0_i32, %c0_i32_0 : i32, i32
  }
  func.func @transform_5(%arg0: i32) -> (i32, i32) {
    %c0_i32 = arith.constant 0 : i32
    %c0_i32_0 = arith.constant 0 : i32
    %c0_i32_1 = arith.constant 0 : i32
    return %c0_i32, %c0_i32_0 : i32, i32
  }
  func.func @transform_6(%arg0: i32) -> (i32, i32) {
    %c0_i32 = arith.constant 0 : i32
    %c0_i32_0 = arith.constant 0 : i32
    %c0_i32_1 = arith.constant 0 : i32
    return %c0_i32, %c0_i32_0 : i32, i32
  }
  func.func @transform_7(%arg0: i32) -> (i32, i32) {
    %c0_i32 = arith.constant 0 : i32
    %c0_i32_0 = arith.constant 0 : i32
    return %arg0, %c0_i32 : i32, i32
  }
}

</mosaic_0001>

<llo_original>
// kernel: tpu_custom_call.1
$region0: #{tpu_custom_call.1}
  #allocation0 [shape = 'u32[]', space=smem, size = 0x4, offset = 0x4, fixed_abs, tag = 'smem constant byte address 0x4 - core index']
  #allocation1 [shape = 'u32[144,128]{1,0:T(1,128)}', space=vmem, size = 0x12000, scoped, tag = 'internal scratch']
  #allocation2 [shape = 'bf16[1,1]{1,0:T(2,128)S(1)}', space=vmem, size = 0x200, scoped, tag = 'scoped memory for tpu_custom_call.1']
  %s0 = inlined_call_operand.vmem [shape: f32[24,4], index: 0, kind: input, shape index: {}]
  %s1 = inlined_call_operand.vmem [shape: bf16[4,128], index: 1, kind: input, shape index: {}]
  %s2 = inlined_call_operand.vmem [shape: bf16[1,128], index: 2, kind: input, shape index: {}]
  %s3 = inlined_call_operand.hbm [shape: bf16[128,128], index: 3, kind: input, shape index: {}]
  %s4 = inlined_call_operand.vmem [shape: bf16[1,128], index: 4, kind: input, shape index: {}]
  %s5 = inlined_call_operand.vmem [shape: bf16[1,128], index: 5, kind: input, shape index: {}]
  %s6 = inlined_call_operand.<no memory space> [shape: bf16[1,1], index: 6, kind: input, shape index: {}]
  %s7 = inlined_call_operand.vmem [shape: f32[24,1], index: 7, kind: output, shape index: {}]
  %s8 = sld [smem:[#allocation0]]
  $region113: #{tpu_custom_call.1} parent=0
    _
  %s10 = ssub.s32 1, %s8
  %s11 = scalar_select 0, %s10, %s8
  %v12 = vstv %s6
  %13 = vst [vmem:[#allocation2] sm:$0x1] %v12
  $region1: #{tpu_custom_call.1} parent=0
    #allocation3 [shape = 'u8[32768]{0}', space=vmem, size = 0x8000, scoped, tag = 'input window, operand 3, single buffered']
    #allocation4 [shape = 's32[2]{0}', space=sflag, size = 0x8, scoped, tag = 'scoped memory for tpu_custom_call.1']
    #allocation5 [shape = 'u8[16384]{0}', space=vmem, size = 0x4000, scoped, tag = 'output window, operand 0']
    %14 = vsyncpa [#allocation4], 0
    loop: start=0, step=1, limit=4
    $region2: #{tpu_custom_call.1} parent=1 // loop_pre_header
      _
    $region3: #{tpu_custom_call.1} parent=1 // loop_header
      %s16 = sphi 0, %s20
      %p17 = scmp.ge.s32.totalorder %s16, 4
      %s26 = sphi 0, %s28
      %s29 = sphi 0, %s26
      %s30 = sphi 0, %s29
      %s46 = sphi 0, %s30
      %s50 = sphi 0, %s50
      %s52 = sphi 0, %s50
      %s53 = sphi 0, %s52
      %s67 = sphi 0, %s53
      %s71 = sphi 0, %s71
      %s73 = sphi 0, %s71
      %s74 = sphi 0, %s73
      %s88 = sphi 0, %s74
      %s92 = sphi 0, %s92
      %s94 = sphi 0, %s92
      %s95 = sphi 0, %s94
      %s109 = sphi 0, %s95
      %s113 = sphi 0, %s113
      %s115 = sphi 0, %s113
      %s116 = sphi 0, %s115
      %s130 = sphi 0, %s116
      %s134 = sphi 0, %s134
      %s136 = sphi 0, %s134
      %s137 = sphi 0, %s136
      %s151 = sphi 0, %s137
      %s155 = sphi 0, %s155
      %s157 = sphi 0, %s155
      %s158 = sphi 0, %s157
      %s172 = sphi 0, %s158
      %s178 = sphi 0, %s180
      %s181 = sphi 0, %s178
      %s182 = sphi 0, %s181
      %s198 = sphi 0, %s182
    $region4: #{tpu_custom_call.1} parent=1 // loop_header_branch
      %19 = sbr.rel (%p17) target = $region8
    $region5: #{tpu_custom_call.1} parent=1 // loop_body
      %s21 = ssub.s32 %s16, 1
      %s22 = ssub.s32 %s16, 2
      %s23 = sadd.s32 %s16, 1
      %s24 = ssub.s32 %s16, %s23
      %p25 = scmp.eq.s32.totalorder %s24, 0
      %s27 = sadd.s32 %s26, 1
      %s28 = scalar_select %p25, %s26, %s27
      %p31 = pneg %p25
      %p32 = scmp.eq.s32.totalorder %s16, 1
      %p33 = por %p31, %p32
      %p34 = scmp.ne.s32.totalorder %s26, %s29
      %p35 = scmp.eq.s32.totalorder %s16, 0
      %p36 = por %p34, %p35
      %p37 = scmp.ne.s32.totalorder %s26, %s29
      %p38 = scmp.eq.s32.totalorder %s21, 1
      %p39 = por %p37, %p38
      %p40 = scmp.ne.s32.totalorder %s29, %s30
      %p41 = scmp.eq.s32.totalorder %s21, 0
      %p42 = por %p40, %p41
      %p43 = scmp.ne.s32.totalorder %s29, %s30
      %p44 = scmp.eq.s32.totalorder %s22, 1
      %p45 = por %p43, %p44
      %p47 = scmp.ne.s32.totalorder %s30, %s46
      %p48 = scmp.eq.s32.totalorder %s22, 0
      %p49 = por %p47, %p48
      %s51 = sadd.s32 %s50, 1
      %p54 = scmp.eq.s32.totalorder %s16, 1
      %p55 = scmp.ne.s32.totalorder %s50, %s52
      %p56 = scmp.eq.s32.totalorder %s16, 0
      %p57 = por %p55, %p56
      %p58 = scmp.ne.s32.totalorder %s50, %s52
      %p59 = scmp.eq.s32.totalorder %s21, 1
      %p60 = por %p58, %p59
      %p61 = scmp.ne.s32.totalorder %s52, %s53
      %p62 = scmp.eq.s32.totalorder %s21, 0
      %p63 = por %p61, %p62
      %p64 = scmp.ne.s32.totalorder %s52, %s53
      %p65 = scmp.eq.s32.totalorder %s22, 1
      %p66 = por %p64, %p65
      %p68 = scmp.ne.s32.totalorder %s53, %s67
      %p69 = scmp.eq.s32.totalorder %s22, 0
      %p70 = por %p68, %p69
      %s72 = sadd.s32 %s71, 1
      %p75 = scmp.eq.s32.totalorder %s16, 1
      %p76 = scmp.ne.s32.totalorder %s71, %s73
      %p77 = scmp.eq.s32.totalorder %s16, 0
      %p78 = por %p76, %p77
      %p79 = scmp.ne.s32.totalorder %s71, %s73
      %p80 = scmp.eq.s32.totalorder %s21, 1
      %p81 = por %p79, %p80
      %p82 = scmp.ne.s32.totalorder %s73, %s74
      %p83 = scmp.eq.s32.totalorder %s21, 0
      %p84 = por %p82, %p83
      %p85 = scmp.ne.s32.totalorder %s73, %s74
      %p86 = scmp.eq.s32.totalorder %s22, 1
      %p87 = por %p85, %p86
      %p89 = scmp.ne.s32.totalorder %s74, %s88
      %p90 = scmp.eq.s32.totalorder %s22, 0
      %p91 = por %p89, %p90
      %s93 = sadd.s32 %s92, 1
      %p96 = scmp.eq.s32.totalorder %s16, 1
      %p97 = scmp.ne.s32.totalorder %s92, %s94
      %p98 = scmp.eq.s32.totalorder %s16, 0
      %p99 = por %p97, %p98
      %p100 = scmp.ne.s32.totalorder %s92, %s94
      %p101 = scmp.eq.s32.totalorder %s21, 1
      %p102 = por %p100, %p101
      %p103 = scmp.ne.s32.totalorder %s94, %s95
      %p104 = scmp.eq.s32.totalorder %s21, 0
      %p105 = por %p103, %p104
      %p106 = scmp.ne.s32.totalorder %s94, %s95
      %p107 = scmp.eq.s32.totalorder %s22, 1
      %p108 = por %p106, %p107
      %p110 = scmp.ne.s32.totalorder %s95, %s109
      %p111 = scmp.eq.s32.totalorder %s22, 0
      %p112 = por %p110, %p111
      %s114 = sadd.s32 %s113, 1
      %p117 = scmp.eq.s32.totalorder %s16, 1
      %p118 = scmp.ne.s32.totalorder %s113, %s115
      %p119 = scmp.eq.s32.totalorder %s16, 0
      %p120 = por %p118, %p119
      %p121 = scmp.ne.s32.totalorder %s113, %s115
      %p122 = scmp.eq.s32.totalorder %s21, 1
      %p123 = por %p121, %p122
      %p124 = scmp.ne.s32.totalorder %s115, %s116
      %p125 = scmp.eq.s32.totalorder %s21, 0
      %p126 = por %p124, %p125
      %p127 = scmp.ne.s32.totalorder %s115, %s116
      %p128 = scmp.eq.s32.totalorder %s22, 1
      %p129 = por %p127, %p128
      %p131 = scmp.ne.s32.totalorder %s116, %s130
      %p132 = scmp.eq.s32.totalorder %s22, 0
      %p133 = por %p131, %p132
      %s135 = sadd.s32 %s134, 1
      %p138 = scmp.eq.s32.totalorder %s16, 1
      %p139 = scmp.ne.s32.totalorder %s134, %s136
      %p140 = scmp.eq.s32.totalorder %s16, 0
      %p141 = por %p139, %p140
      %p142 = scmp.ne.s32.totalorder %s134, %s136
      %p143 = scmp.eq.s32.totalorder %s21, 1
      %p144 = por %p142, %p143
      %p145 = scmp.ne.s32.totalorder %s136, %s137
      %p146 = scmp.eq.s32.totalorder %s21, 0
      %p147 = por %p145, %p146
      %p148 = scmp.ne.s32.totalorder %s136, %s137
      %p149 = scmp.eq.s32.totalorder %s22, 1
      %p150 = por %p148, %p149
      %p152 = scmp.ne.s32.totalorder %s137, %s151
      %p153 = scmp.eq.s32.totalorder %s22, 0
      %p154 = por %p152, %p153
      %s156 = sadd.s32 %s155, 1
      %p159 = scmp.eq.s32.totalorder %s16, 1
      %p160 = scmp.ne.s32.totalorder %s155, %s157
      %p161 = scmp.eq.s32.totalorder %s16, 0
      %p162 = por %p160, %p161
      %p163 = scmp.ne.s32.totalorder %s155, %s157
      %p164 = scmp.eq.s32.totalorder %s21, 1
      %p165 = por %p163, %p164
      %p166 = scmp.ne.s32.totalorder %s157, %s158
      %p167 = scmp.eq.s32.totalorder %s21, 0
      %p168 = por %p166, %p167
      %p169 = scmp.ne.s32.totalorder %s157, %s158
      %p170 = scmp.eq.s32.totalorder %s22, 1
      %p171 = por %p169, %p170
      %p173 = scmp.ne.s32.totalorder %s158, %s172
      %p174 = scmp.eq.s32.totalorder %s22, 0
      %p175 = por %p173, %p174
      %s176 = ssub.s32 %s16, %s23
      %p177 = scmp.eq.s32.totalorder %s176, 0
      %s179 = sadd.s32 %s178, 1
      %s180 = scalar_select %p177, %s178, %s179
      %p183 = pneg %p177
      %p184 = scmp.eq.s32.totalorder %s16, 1
      %p185 = por %p183, %p184
      %p186 = scmp.ne.s32.totalorder %s178, %s181
      %p187 = scmp.eq.s32.totalorder %s16, 0
      %p188 = por %p186, %p187
      %p189 = scmp.ne.s32.totalorder %s178, %s181
      %p190 = scmp.eq.s32.totalorder %s21, 1
      %p191 = por %p189, %p190
      %p192 = scmp.ne.s32.totalorder %s181, %s182
      %p193 = scmp.eq.s32.totalorder %s21, 0
      %p194 = por %p192, %p193
      %p195 = scmp.ne.s32.totalorder %s181, %s182
      %p196 = scmp.eq.s32.totalorder %s22, 1
      %p197 = por %p195, %p196
      %p199 = scmp.ne.s32.totalorder %s182, %s198
      %p200 = scmp.eq.s32.totalorder %s22, 0
      %p201 = por %p199, %p200
      %p202 = scmp.le.s32.totalorder 1, %s16
      %p203 = scmp.lt.s32.totalorder %s16, 3
      %p204 = pnand %p202, %p203
      %p205 = pneg %p204
      // Predicated region
      $region9: #{tpu_custom_call.1} parent=5 // pred_check
        _
      $region10: #{tpu_custom_call.1} parent=5 // pred_check_branch
        %207 = sbr.rel (%p204) target = $region12
      $region11: #{tpu_custom_call.1} parent=5 // pred_region
        %s208 = ssub.s32 %s16, 1
        // Predicated region
        $region13: #{tpu_custom_call.1} parent=11 // pred_check
          %p209 = pneg %p63
        $region14: #{tpu_custom_call.1} parent=11 // pred_check_branch
          %211 = sbr.rel (%p209) target = $region16
        $region15: #{tpu_custom_call.1} parent=11 // pred_region
          _
        $region16: #{tpu_custom_call.1} parent=11 // pred_fallthru
          _
        // Predicated region
        $region17: #{tpu_custom_call.1} parent=11 // pred_check
          %p212 = pneg %p84
        $region18: #{tpu_custom_call.1} parent=11 // pred_check_branch
          %214 = sbr.rel (%p212) target = $region20
        $region19: #{tpu_custom_call.1} parent=11 // pred_region
          _
        $region20: #{tpu_custom_call.1} parent=11 // pred_fallthru
          _
        // Predicated region
        $region21: #{tpu_custom_call.1} parent=11 // pred_check
          %p215 = pneg %p105
        $region22: #{tpu_custom_call.1} parent=11 // pred_check_branch
          %217 = sbr.rel (%p215) target = $region24
        $region23: #{tpu_custom_call.1} parent=11 // pred_region
          %s219 = ssub.s32 1024, 1024
          %220 = vsyncadd [#allocation4], %s219
          %s221 = sshll.u32 [#allocation3], 4
          %s222 = int_to_ptr.vmem [resolvable:$true] %s221
          %227 = dma.hbm_to_vmem [thread:$0]  %s3, 1024, %s222, [#allocation4], 64, 64, 4
        $region24: #{tpu_custom_call.1} parent=11 // pred_fallthru
          _
        // Predicated region
        $region25: #{tpu_custom_call.1} parent=11 // pred_check
          %p228 = pneg %p126
        $region26: #{tpu_custom_call.1} parent=11 // pred_check_branch
          %230 = sbr.rel (%p228) target = $region28
        $region27: #{tpu_custom_call.1} parent=11 // pred_region
          _
        $region28: #{tpu_custom_call.1} parent=11 // pred_fallthru
          _
        // Predicated region
        $region29: #{tpu_custom_call.1} parent=11 // pred_check
          %p231 = pneg %p147
        $region30: #{tpu_custom_call.1} parent=11 // pred_check_branch
          %233 = sbr.rel (%p231) target = $region32
        $region31: #{tpu_custom_call.1} parent=11 // pred_region
          _
        $region32: #{tpu_custom_call.1} parent=11 // pred_fallthru
          _
        // Predicated region
        $region33: #{tpu_custom_call.1} parent=11 // pred_check
          %p234 = pneg %p168
        $region34: #{tpu_custom_call.1} parent=11 // pred_check_branch
          %236 = sbr.rel (%p234) target = $region36
        $region35: #{tpu_custom_call.1} parent=11 // pred_region
          _
        $region36: #{tpu_custom_call.1} parent=11 // pred_fallthru
          _
      $region12: #{tpu_custom_call.1} parent=5 // pred_fallthru
        _
      %p237 = scmp.lt.s32.totalorder %s16, 2
      // Predicated region
      $region37: #{tpu_custom_call.1} parent=5 // pred_check
        %p238 = pneg %p237
      $region38: #{tpu_custom_call.1} parent=5 // pred_check_branch
        %240 = sbr.rel (%p238) target = $region40
      $region39: #{tpu_custom_call.1} parent=5 // pred_region
        // Predicated region
        $region41: #{tpu_custom_call.1} parent=39 // pred_check
          %p241 = pneg %p36
        $region42: #{tpu_custom_call.1} parent=39 // pred_check_branch
          %243 = sbr.rel (%p241) target = $region44
        $region43: #{tpu_custom_call.1} parent=39 // pred_region
          %s244 = smul.u32 2, %s16
          %s245 = ssub.s32 3, %s244
          %p246 = scmp.lt.s32.totalorder %s245, 2
          %s247 = scalar_select %p246, %s245, 2
          %s248 = smul.u32 128, %s247
          %p249 = scmp.lt.s32.totalorder %s244, 2
          %s250 = scalar_select %p249, %s244, 2
          %s251 = smul.addr %s250, 8
          %s252 = scalar_lea.vmem %s0, %s251
          %s253 = smul.u32 2, %s16
          %s254 = ssub.s32 3, %s253
          %p255 = scmp.lt.s32.totalorder %s254, 2
          %s256 = scalar_select %p255, %s254, 2
          %s257 = smul.u32 128, %s256
        $region44: #{tpu_custom_call.1} parent=39 // pred_fallthru
          _
      $region40: #{tpu_custom_call.1} parent=5 // pred_fallthru
        _
      %p258 = scmp.le.s32.totalorder 1, %s16
      %p259 = scmp.lt.s32.totalorder %s16, 3
      %p260 = pnand %p258, %p259
      %p261 = pneg %p260
      // Predicated region
      $region45: #{tpu_custom_call.1} parent=5 // pred_check
        _
      $region46: #{tpu_custom_call.1} parent=5 // pred_check_branch
        %263 = sbr.rel (%p260) target = $region48
      $region47: #{tpu_custom_call.1} parent=5 // pred_region
        %s264 = ssub.s32 %s16, 1
        // Predicated region
        $region49: #{tpu_custom_call.1} parent=47 // pred_check
          %p265 = pneg %p105
        $region50: #{tpu_custom_call.1} parent=47 // pred_check_branch
          %267 = sbr.rel (%p265) target = $region52
        $region51: #{tpu_custom_call.1} parent=47 // pred_region
          %268 = dma.done [#allocation4], 1024
        $region52: #{tpu_custom_call.1} parent=47 // pred_fallthru
          _
        %s269 = smul.u32 2, %s21
        %s270 = ssub.s32 3, %s269
        %p271 = scmp.lt.s32.totalorder %s270, 2
        %s272 = scalar_select %p271, %s270, 2
        %s273 = smul.u32 128, %s272
        %p274 = scmp.lt.s32.totalorder %s269, 2
        %s275 = scalar_select %p274, %s269, 2
        %s276 = smul.addr %s275, 8
        %s277 = scalar_lea.vmem %s0, %s276
        %p278 = pneg %p42
        %p279 = pneg %p39
        %p280 = pneg %p63
        %p281 = pneg %p60
        %p282 = pneg %p84
        %p283 = pneg %p81
        %p284 = pneg %p105
        %p285 = pneg %p102
        %p286 = pneg %p126
        %p287 = pneg %p123
        %p288 = pneg %p147
        %p289 = pneg %p144
        %p290 = pneg %p168
        %p291 = pneg %p165
        %p292 = pneg %p194
        %p293 = pneg %p191
        %s294 = sand.u32 %s181, 1
        %s295 = sand.u32 %s181, 1
        %s296 = smul.addr %s295, 16
        %s297 = scalar_lea.vmem [#allocation5], %s296
        %s298 = smul.u32 2, %s21
        %s299 = ssub.s32 3, %s298
        %p300 = scmp.lt.s32.totalorder %s299, 2
        %s301 = scalar_select %p300, %s299, 2
        %s302 = smul.u32 128, %s301
        %p303 = scmp.lt.s32.totalorder %s298, 2
        %s304 = scalar_select %p303, %s298, 2
        %s305 = smul.addr %s304, 8
        %s306 = scalar_lea.vmem %s0, %s305
        %s307 = smul.u32 2, %s21
        %s308 = ssub.s32 3, %s307
        %p309 = scmp.lt.s32.totalorder %s308, 2
        %s310 = scalar_select %p309, %s308, 2
        %s311 = smul.u32 128, %s310
        %s312 = smul.u32 2, %s21
        %s313 = ssub.s32 3, %s312
        %p314 = scmp.lt.s32.totalorder %s313, 2
        %s315 = scalar_select %p314, %s313, 2
        %s316 = smul.u32 128, %s315
        %v318 = vld [vmem:[%s306] sm:$0xff]
        %v319 = vld [vmem:[%s306 + $0x8] sm:$0xff]
        %v320 = vld [vmem:[%s1] sm:$0x1]
        %v321 = vunpack.c.l.bf16 %v320
        %323 = vset.pattern.permute.xlu0 0
        %324 = vperm.xlu0 %323, %v318
        %v325 = vpop.permute.xlu0 %324
        %328 = vset.pattern.permute.xlu0 0
        %329 = vperm.xlu0 %328, %v319
        %v330 = vpop.permute.xlu0 %329
        %v332 = vlaneseq
        %v333 = vshrl.u32 %v332, 7
        %v334 = vsub.s32 0, %v333
        %v335 = vrot.slane %v321, %v334
        %v336 = vmul.f32 %v325, %v335
        %v337 = vmul.f32 %v330, %v335
        %338 = vset.pattern.permute.xlu0 1
        %339 = vperm.xlu0 %338, %v318
        %v340 = vpop.permute.xlu0 %339
        %342 = vset.pattern.permute.xlu0 1
        %343 = vperm.xlu0 %342, %v319
        %v344 = vpop.permute.xlu0 %343
        %v346 = vlaneseq
        %v347 = vshrl.u32 %v346, 7
        %v348 = vsub.s32 1, %v347
        %v349 = vrot.slane %v321, %v348
        %v350 = vmul.f32 %v340, %v349
        %v351 = vmul.f32 %v344, %v349
        %v352 = vadd.f32 %v336, %v350
        %v353 = vadd.f32 %v337, %v351
        %v354 = vld [vmem:[%s1] sm:$0x2]
        %v355 = vunpack.c.l.bf16 %v354
        %356 = vset.pattern.permute.xlu0 2
        %357 = vperm.xlu0 %356, %v318
        %v358 = vpop.permute.xlu0 %357
        %360 = vset.pattern.permute.xlu0 2
        %361 = vperm.xlu0 %360, %v319
        %v362 = vpop.permute.xlu0 %361
        %v364 = vlaneseq
        %v365 = vshrl.u32 %v364, 7
        %v366 = vsub.s32 2, %v365
        %v367 = vrot.slane %v355, %v366
        %v368 = vmul.f32 %v358, %v367
        %v369 = vmul.f32 %v362, %v367
        %v370 = vadd.f32 %v352, %v368
        %v371 = vadd.f32 %v353, %v369
        %372 = vset.pattern.permute.xlu0 3
        %373 = vperm.xlu0 %372, %v318
        %v374 = vpop.permute.xlu0 %373
        %376 = vset.pattern.permute.xlu0 3
        %377 = vperm.xlu0 %376, %v319
        %v378 = vpop.permute.xlu0 %377
        %v380 = vlaneseq
        %v381 = vshrl.u32 %v380, 7
        %v382 = vsub.s32 3, %v381
        %v383 = vrot.slane %v355, %v382
        %v384 = vmul.f32 %v374, %v383
        %v385 = vmul.f32 %v378, %v383
        %v386 = vadd.f32 %v370, %v384
        %v387 = vadd.f32 %v371, %v385
        %v388 = vld [vmem:[%s2] sm:$0x1]
        %v389 = vunpack.c.l.bf16 %v388
        %v390 = vlaneseq
        %v391 = vshrl.u32 %v390, 7
        %v392 = vsub.s32 0, %v391
        %v393 = vrot.slane %v389, %v392
        %v394 = vadd.f32 %v386, %v393
        %v395 = vadd.f32 %v387, %v393
        %v396 = vmax.f32 %v394, 0.0
        %v397 = vmax.f32 %v395, 0.0
        %v398 = vpack.c.bf16 %v397, %v396
        %v399 = vld [vmem:[#allocation3] sm:$0xf]
        %v400 = vld [vmem:[#allocation3 + $0x4] sm:$0xf]
        %v401 = vld [vmem:[#allocation3 + $0x8] sm:$0xf]
        %v402 = vld [vmem:[#allocation3 + $0xc] sm:$0xf]
        %v403 = vld [vmem:[#allocation3 + $0x10] sm:$0xf]
        %v404 = vld [vmem:[#allocation3 + $0x14] sm:$0xf]
        %v405 = vld [vmem:[#allocation3 + $0x18] sm:$0xf]
        %v406 = vld [vmem:[#allocation3 + $0x1c] sm:$0xf]
        %v407 = vld [vmem:[#allocation3 + $0x20] sm:$0xf]
        %v408 = vld [vmem:[#allocation3 + $0x24] sm:$0xf]
        %v409 = vld [vmem:[#allocation3 + $0x28] sm:$0xf]
        %v410 = vld [vmem:[#allocation3 + $0x2c] sm:$0xf]
        %v411 = vld [vmem:[#allocation3 + $0x30] sm:$0xf]
        %v412 = vld [vmem:[#allocation3 + $0x34] sm:$0xf]
        %v413 = vld [vmem:[#allocation3 + $0x38] sm:$0xf]
        %v414 = vld [vmem:[#allocation3 + $0x3c] sm:$0xf]
        %v415 = vld [vmem:[%s4] sm:$0x1]
        %v416 = vunpack.c.l.bf16 %v415
        %v417 = vlaneseq
        %v418 = vshrl.u32 %v417, 7
        %v419 = vsub.s32 0, %v418
        %v420 = vrot.slane %v416, %v419
        %v437 = vunpack.c.l.b16 %v399
        %v438 = vunpack.c.l.b16 %v400
        %v439 = vunpack.c.l.b16 %v401
        %v440 = vunpack.c.l.b16 %v402
        %v441 = vunpack.c.l.b16 %v403
        %v442 = vunpack.c.l.b16 %v404
        %v443 = vunpack.c.l.b16 %v405
        %v444 = vunpack.c.l.b16 %v406
        %v445 = vunpack.c.l.b16 %v407
        %v446 = vunpack.c.l.b16 %v408
        %v447 = vunpack.c.l.b16 %v409
        %v448 = vunpack.c.l.b16 %v410
        %v449 = vunpack.c.l.b16 %v411
        %v450 = vunpack.c.l.b16 %v412
        %v451 = vunpack.c.l.b16 %v413
        %v452 = vunpack.c.l.b16 %v414
        %v453 = vpack.c.b16 %v438, %v437
        %v454 = vpack.c.b16 %v440, %v439
        %v455 = vpack.c.b16 %v442, %v441
        %v456 = vpack.c.b16 %v444, %v443
        %v457 = vpack.c.b16 %v446, %v445
        %v458 = vpack.c.b16 %v448, %v447
        %v459 = vpack.c.b16 %v450, %v449
        %v460 = vpack.c.b16 %v452, %v451
        %469 = vmatprep.subr.bf16.mxu0 0
        %470 = vmatpush1.bf16.msra.mxu0 %v453
        %471 = vmatprep.subr.bf16.mxu0 0
        %472 = vmatpush1.bf16.msra.mxu0 %v454
        %473 = vmatprep.subr.bf16.mxu0 0
        %474 = vmatpush1.bf16.msra.mxu0 %v455
        %475 = vmatprep.subr.bf16.mxu0 0
        %476 = vmatpush1.bf16.msra.mxu0 %v456
        %477 = vmatprep.subr.bf16.mxu0 0
        %478 = vmatpush1.bf16.msra.mxu0 %v457
        %479 = vmatprep.subr.bf16.mxu0 0
        %480 = vmatpush1.bf16.msra.mxu0 %v458
        %481 = vmatprep.subr.bf16.mxu0 0
        %482 = vmatpush1.bf16.msra.mxu0 %v459
        %483 = vmatprep.subr.bf16.mxu0 0
        %484 = vmatpush1.bf16.msra.mxu0 %v460
        %485 = vmatprep.subr.bf16.mxu0 0
        %486 = vmatpush1.bf16.msra.mxu0 0
        %487 = vmatprep.subr.bf16.mxu0 0
        %488 = vmatpush1.bf16.msra.mxu0 0
        %489 = vmatprep.subr.bf16.mxu0 0
        %490 = vmatpush1.bf16.msra.mxu0 0
        %491 = vmatprep.subr.bf16.mxu0 0
        %492 = vmatpush1.bf16.msra.mxu0 0
        %493 = vmatprep.subr.bf16.mxu0 0
        %494 = vmatpush1.bf16.msra.mxu0 0
        %495 = vmatprep.subr.bf16.mxu0 0
        %496 = vmatpush1.bf16.msra.mxu0 0
        %497 = vmatprep.subr.bf16.mxu0 0
        %498 = vmatpush1.bf16.msra.mxu0 0
        %499 = vmatprep.subr.bf16.mxu0 0
        %500 = vmatpush1.bf16.msra.mxu0 0
        %501 = vmatprep.mubr.bf16.mxu0 0
        %502 = vmatmul.mubr.bf16.gmra.mrb[0].mxu0 %v398
        %v503 = vpop.f32.mrb[0].mxu0
        %v504 = vadd.f32 %v420, %v503
        %v505 = vpop.f32.mrb[0].mxu0
        %v506 = vpop.f32.mrb[0].mxu0
        %v507 = vadd.f32 %v420, %v506
        %v508 = vpop.f32.mrb[0].mxu0
        %509 = vdwg.mxu0
        %v510 = vmax.f32 %v504, 0.0
        %v511 = vmax.f32 %v507, 0.0
        %v512 = vld [vmem:[%s5] sm:$0x1]
        %v513 = vunpack.c.l.bf16 %v512
        %v514 = vlaneseq
        %v515 = vshrl.u32 %v514, 7
        %v516 = vsub.s32 0, %v515
        %v517 = vrot.slane %v513, %v516
        %v518 = vmul.f32 %v510, %v517
        %v519 = vmul.f32 %v511, %v517
        %520 = vadd.xlane.f32.xlu0 %v518
        %v521 = vpop.xlane.xlu0 %520
        %522 = vadd.xlane.f32.xlu0 %v519
        %v523 = vpop.xlane.xlu0 %522
        %v524 = vld [vmem:[#allocation2] sm:$0x1]
        %v525 = vunpack.c.l.bf16 %v524
        %v526 = vlaneseq
        %v527 = vshrl.u32 %v526, 7
        %v528 = vsub.s32 0, %v527
        %v529 = vrot.slane %v525, %v528
        %v530 = vadd.f32 %v521, %v529
        %v531 = vadd.f32 %v523, %v529
        %vm532 = vcmask 7168
        %533 = vst.msk [vmem:[%s297] sm:$0xff] %vm532, %v530
        %534 = vst.msk [vmem:[%s297 + $0x8] sm:$0xff] %vm532, %v531
        %s535 = sand.u32 %s181, 1
        %s536 = sand.u32 %s181, 1
        %s537 = smul.addr %s536, 16
        %s538 = scalar_lea.vmem [#allocation5], %s537
        // Predicated region
        $region53: #{tpu_custom_call.1} parent=47 // pred_check
          %p539 = pneg %p191
        $region54: #{tpu_custom_call.1} parent=47 // pred_check_branch
          %541 = sbr.rel (%p539) target = $region56
        $region55: #{tpu_custom_call.1} parent=47 // pred_region
          %s542 = smul.u32 2, %s21
          %s543 = ssub.s32 3, %s542
          %p544 = scmp.lt.s32.totalorder %s543, 2
          %s545 = scalar_select %p544, %s543, 2
          %s546 = smul.u32 128, %s545
          %p547 = scmp.ne.s32.totalorder 0, %s546
          %s548 = smul.addr %s542, 8
          %s549 = scalar_lea.vmem %s7, %s548
          // Predicated region
          $region57: #{tpu_custom_call.1} parent=55 // pred_check
            %p550 = pneg %p547
          $region58: #{tpu_custom_call.1} parent=55 // pred_check_branch
            %552 = sbr.rel (%p550) target = $region60
          $region59: #{tpu_custom_call.1} parent=55 // pred_region
            // Predicated region
            $region61: #{tpu_custom_call.1} parent=59 // pred_check
              _
            $region62: #{tpu_custom_call.1} parent=59 // pred_check_branch
              %554 = sbr.rel (0) target = $region64
            $region63: #{tpu_custom_call.1} parent=59 // pred_region
              // Predicated region
              $region83: #{tpu_custom_call.1} parent=63 // pred_check
                _
              $region84: #{tpu_custom_call.1} parent=63 // pred_check_branch
                %605 = sbr.rel (0) target = $region86
              $region85: #{tpu_custom_call.1} parent=63 // pred_region
                %s606 = sshrl.u32 %s545, 1
                // While loop
                $region87: #{tpu_custom_call.1} parent=85 // loop_pre_header
                  _
                $region88: #{tpu_custom_call.1} parent=85 // loop_header
                  %s608 = sphi 0, %s610
                  %p609 = scmp.ge.s32.totalorder %s608, %s606
                  %s613 = sphi 0, %s622
                  %s614 = sphi %s538, %s625
                  %s615 = sphi %s549, %s626
                $region89: #{tpu_custom_call.1} parent=85 // loop_header_branch
                  %612 = sbr.rel (%p609) target = $region93
                $region90: #{tpu_custom_call.1} parent=85 // loop_body
                  %v616 = vld [vmem:[%s614] sm:$0xff]
                  %617 = vst [vmem:[%s615] sm:$0xff] %v616
                  %v618 = vld [vmem:[%s614 + $0x8] sm:$0xff]
                  %619 = vst [vmem:[%s615 + $0x8] sm:$0xff] %v618
                  %s620 = sadd.s32 1, %s613
                  %p621 = scmp.ge.s32.totalorder %s620, %s606
                  %s622 = scalar_select %p621, 0, %s620
                  %s623 = smul.u32 %s622, 16
                  %s624 = smul.u32 %s622, 16
                  %s625 = scalar_lea.vmem %s538, %s623 [#allocation5]
                  %s626 = scalar_lea.vmem %s549, %s624
                $region91: #{tpu_custom_call.1} parent=85 // loop_footer
                  %s610 = sadd.s32 %s608, 1
                $region92: #{tpu_custom_call.1} parent=85 // loop_footer_branch
                  %607 = sbr.rel target = $region88
                $region93: #{tpu_custom_call.1} parent=85 // loop_exit
                  _
                %s627 = sshrl.u32 %s545, 1
                %s628 = sand.u32 %s545, 1
                %s629 = smul.u32 %s627, 2
                %s630 = smul.u32 8, %s629
                %s631 = scalar_lea.vmem %s538, %s630 [#allocation5]
                %s632 = smul.u32 8, %s629
                %s633 = scalar_lea.vmem %s549, %s632
                // While loop
                $region94: #{tpu_custom_call.1} parent=85 // loop_pre_header
                  _
                $region95: #{tpu_custom_call.1} parent=85 // loop_header
                  %s635 = sphi 0, %s637
                  %p636 = scmp.ge.s32.totalorder %s635, %s628
                  %s640 = sphi 0, %s647
                  %s641 = sphi %s631, %s650
                  %s642 = sphi %s633, %s651
                $region96: #{tpu_custom_call.1} parent=85 // loop_header_branch
                  %639 = sbr.rel (%p636) target = $region100
                $region97: #{tpu_custom_call.1} parent=85 // loop_body
                  %v643 = vld [vmem:[%s641] sm:$0xff]
                  %644 = vst [vmem:[%s642] sm:$0xff] %v643
                  %s645 = sadd.s32 1, %s640
                  %p646 = scmp.ge.s32.totalorder %s645, %s628
                  %s647 = scalar_select %p646, 0, %s645
                  %s648 = smul.u32 %s647, 8
                  %s649 = smul.u32 %s647, 8
                  %s650 = scalar_lea.vmem %s631, %s648 [#allocation5]
                  %s651 = scalar_lea.vmem %s633, %s649
                $region98: #{tpu_custom_call.1} parent=85 // loop_footer
                  %s637 = sadd.s32 %s635, 1
                $region99: #{tpu_custom_call.1} parent=85 // loop_footer_branch
                  %634 = sbr.rel target = $region95
                $region100: #{tpu_custom_call.1} parent=85 // loop_exit
                  _
              $region86: #{tpu_custom_call.1} parent=63 // pred_fallthru
                _
              // Predicated region
              $region101: #{tpu_custom_call.1} parent=63 // pred_check
                _
              $region102: #{tpu_custom_call.1} parent=63 // pred_check_branch
                %653 = sbr.rel target = $region104
              $region103: #{tpu_custom_call.1} parent=63 // pred_region
                _
              $region104: #{tpu_custom_call.1} parent=63 // pred_fallthru
                _
            $region64: #{tpu_custom_call.1} parent=59 // pred_fallthru
              _
            // Predicated region
            $region65: #{tpu_custom_call.1} parent=59 // pred_check
              _
            $region66: #{tpu_custom_call.1} parent=59 // pred_check_branch
              %556 = sbr.rel target = $region68
            $region67: #{tpu_custom_call.1} parent=59 // pred_region
              %s558 = sshrl.u32 %s545, 1
              // While loop
              $region69: #{tpu_custom_call.1} parent=67 // loop_pre_header
                _
              $region70: #{tpu_custom_call.1} parent=67 // loop_header
                %s560 = sphi 0, %s562
                %p561 = scmp.ge.s32.totalorder %s560, %s558
                %s565 = sphi 0, %s574
                %s566 = sphi %s538, %s577
                %s567 = sphi %s549, %s578
              $region71: #{tpu_custom_call.1} parent=67 // loop_header_branch
                %564 = sbr.rel (%p561) target = $region75
              $region72: #{tpu_custom_call.1} parent=67 // loop_body
                %v568 = vld [vmem:[%s566] sm:$0xff]
                %569 = vst [vmem:[%s567] sm:$0xff] %v568
                %v570 = vld [vmem:[%s566 + $0x8] sm:$0xff]
                %571 = vst [vmem:[%s567 + $0x8] sm:$0xff] %v570
                %s572 = sadd.s32 1, %s565
                %p573 = scmp.ge.s32.totalorder %s572, %s558
                %s574 = scalar_select %p573, 0, %s572
                %s575 = smul.u32 %s574, 16
                %s576 = smul.u32 %s574, 16
                %s577 = scalar_lea.vmem %s538, %s575 [#allocation5]
                %s578 = scalar_lea.vmem %s549, %s576
              $region73: #{tpu_custom_call.1} parent=67 // loop_footer
                %s562 = sadd.s32 %s560, 1
              $region74: #{tpu_custom_call.1} parent=67 // loop_footer_branch
                %559 = sbr.rel target = $region70
              $region75: #{tpu_custom_call.1} parent=67 // loop_exit
                _
              %s579 = sshrl.u32 %s545, 1
              %s580 = sand.u32 %s545, 1
              %s581 = smul.u32 %s579, 2
              %s582 = smul.u32 8, %s581
              %s583 = scalar_lea.vmem %s538, %s582 [#allocation5]
              %s584 = smul.u32 8, %s581
              %s585 = scalar_lea.vmem %s549, %s584
              // While loop
              $region76: #{tpu_custom_call.1} parent=67 // loop_pre_header
                _
              $region77: #{tpu_custom_call.1} parent=67 // loop_header
                %s587 = sphi 0, %s589
                %p588 = scmp.ge.s32.totalorder %s587, %s580
                %s592 = sphi 0, %s599
                %s593 = sphi %s583, %s602
                %s594 = sphi %s585, %s603
              $region78: #{tpu_custom_call.1} parent=67 // loop_header_branch
                %591 = sbr.rel (%p588) target = $region82
              $region79: #{tpu_custom_call.1} parent=67 // loop_body
                %v595 = vld [vmem:[%s593] sm:$0xff]
                %596 = vst [vmem:[%s594] sm:$0xff] %v595
                %s597 = sadd.s32 1, %s592
                %p598 = scmp.ge.s32.totalorder %s597, %s580
                %s599 = scalar_select %p598, 0, %s597
                %s600 = smul.u32 %s599, 8
                %s601 = smul.u32 %s599, 8
                %s602 = scalar_lea.vmem %s583, %s600 [#allocation5]
                %s603 = scalar_lea.vmem %s585, %s601
              $region80: #{tpu_custom_call.1} parent=67 // loop_footer
                %s589 = sadd.s32 %s587, 1
              $region81: #{tpu_custom_call.1} parent=67 // loop_footer_branch
                %586 = sbr.rel target = $region77
              $region82: #{tpu_custom_call.1} parent=67 // loop_exit
                _
            $region68: #{tpu_custom_call.1} parent=59 // pred_fallthru
              _
          $region60: #{tpu_custom_call.1} parent=55 // pred_fallthru
            _
          %654 = vnop
        $region56: #{tpu_custom_call.1} parent=47 // pred_fallthru
          _
      $region48: #{tpu_custom_call.1} parent=5 // pred_fallthru
        _
      %p655 = scmp.le.s32.totalorder 2, %s16
      // Predicated region
      $region105: #{tpu_custom_call.1} parent=5 // pred_check
        %p656 = pneg %p655
      $region106: #{tpu_custom_call.1} parent=5 // pred_check_branch
        %658 = sbr.rel (%p656) target = $region108
      $region107: #{tpu_custom_call.1} parent=5 // pred_region
        %s659 = ssub.s32 %s16, 2
        // Predicated region
        $region109: #{tpu_custom_call.1} parent=107 // pred_check
          %p660 = pneg %p197
        $region110: #{tpu_custom_call.1} parent=107 // pred_check_branch
          %662 = sbr.rel (%p660) target = $region112
        $region111: #{tpu_custom_call.1} parent=107 // pred_region
          %s663 = sand.u32 %s182, 1
          %s664 = sand.u32 %s182, 1
          %s665 = smul.addr %s664, 16
          %s666 = scalar_lea.vmem [#allocation5], %s665
        $region112: #{tpu_custom_call.1} parent=107 // pred_fallthru
          _
      $region108: #{tpu_custom_call.1} parent=5 // pred_fallthru
        _
    $region6: #{tpu_custom_call.1} parent=1 // loop_footer
      %s20 = sadd.s32 1, %s16
    $region7: #{tpu_custom_call.1} parent=1 // loop_footer_branch
      %15 = sbr.rel target = $region3
    $region8: #{tpu_custom_call.1} parent=1 // loop_exit
      _
    %667 = vsyncpa [#allocation4], 1
    %s668 = scalar_lea.sflag [#allocation4], 1
    %669 = vsyncpa %s668, 1

// kernel: tpu_custom_call.1
$region0: #{tpu_custom_call.1}
  #allocation0 [shape = 'u32[]', space=smem, size = 0x4, offset = 0x4, fixed_abs, tag = 'smem constant byte address 0x4 - core index']
  #allocation1 [shape = 'u32[144,128]{1,0:T(1,128)}', space=vmem, size = 0x12000, scoped, tag = 'internal scratch']
  #allocation2 [shape = 'bf16[1,1]{1,0:T(2,128)S(1)}', space=vmem, size = 0x200, scoped, tag = 'scoped memory for tpu_custom_call.1']
  %s0 = inlined_call_operand.vmem [shape: f32[24,4], index: 0, kind: input, shape index: {}]
  %s1 = inlined_call_operand.vmem [shape: bf16[4,128], index: 1, kind: input, shape index: {}]
  %s2 = inlined_call_operand.vmem [shape: bf16[1,128], index: 2, kind: input, shape index: {}]
  %s3 = inlined_call_operand.hbm [shape: bf16[128,128], index: 3, kind: input, shape index: {}]
  %s4 = inlined_call_operand.vmem [shape: bf16[1,128], index: 4, kind: input, shape index: {}]
  %s5 = inlined_call_operand.vmem [shape: bf16[1,128], index: 5, kind: input, shape index: {}]
  %s6 = inlined_call_operand.<no memory space> [shape: bf16[1,1], index: 6, kind: input, shape index: {}]
  %s7 = inlined_call_operand.vmem [shape: f32[24,1], index: 7, kind: output, shape index: {}]
  %s8 = sld [smem:[#allocation0]]
  $region113: #{tpu_custom_call.1} parent=0
    _
  %s10 = ssub.s32 1, %s8
  %s11 = scalar_select 0, %s10, %s8
  %v12 = vstv %s6
  %13 = vst [vmem:[#allocation2] sm:$0x1] %v12
  $region1: #{tpu_custom_call.1} parent=0
    #allocation3 [shape = 'u8[32768]{0}', space=vmem, size = 0x8000, scoped, tag = 'input window, operand 3, single buffered']
    #allocation4 [shape = 's32[2]{0}', space=sflag, size = 0x8, scoped, tag = 'scoped memory for tpu_custom_call.1']
    #allocation5 [shape = 'u8[16384]{0}', space=vmem, size = 0x4000, scoped, tag = 'output window, operand 0']
    %14 = vsyncpa [#allocation4], 0
    loop: start=0, step=1, limit=4
    $region2: #{tpu_custom_call.1} parent=1 // loop_pre_header
      _
    $region3: #{tpu_custom_call.1} parent=1 // loop_header
      %s16 = sphi 0, %s20
      %p17 = scmp.ge.s32.totalorder %s16, 4
      %s26 = sphi 0, %s28
      %s29 = sphi 0, %s26
      %s30 = sphi 0, %s29
      %s46 = sphi 0, %s30
      %s50 = sphi 0, %s50
      %s52 = sphi 0, %s50
      %s53 = sphi 0, %s52
      %s67 = sphi 0, %s53
      %s71 = sphi 0, %s71
      %s73 = sphi 0, %s71
      %s74 = sphi 0, %s73
      %s88 = sphi 0, %s74
      %s92 = sphi 0, %s92
      %s94 = sphi 0, %s92
      %s95 = sphi 0, %s94
      %s109 = sphi 0, %s95
      %s113 = sphi 0, %s113
      %s115 = sphi 0, %s113
      %s116 = sphi 0, %s115
      %s130 = sphi 0, %s116
      %s134 = sphi 0, %s134
      %s136 = sphi 0, %s134
      %s137 = sphi 0, %s136
      %s151 = sphi 0, %s137
      %s155 = sphi 0, %s155
      %s157 = sphi 0, %s155
      %s158 = sphi 0, %s157
      %s172 = sphi 0, %s158
      %s178 = sphi 0, %s180
      %s181 = sphi 0, %s178
      %s182 = sphi 0, %s181
      %s198 = sphi 0, %s182
    $region4: #{tpu_custom_call.1} parent=1 // loop_header_branch
      %19 = sbr.rel (%p17) target = $region8
    $region5: #{tpu_custom_call.1} parent=1 // loop_body
      %s21 = ssub.s32 %s16, 1
      %s22 = ssub.s32 %s16, 2
      %s23 = sadd.s32 %s16, 1
      %s24 = ssub.s32 %s16, %s23
      %p25 = scmp.eq.s32.totalorder %s24, 0
      %s27 = sadd.s32 %s26, 1
      %s28 = scalar_select %p25, %s26, %s27
      %p31 = pneg %p25
      %p32 = scmp.eq.s32.totalorder %s16, 1
      %p33 = por %p31, %p32
      %p34 = scmp.ne.s32.totalorder %s26, %s29
      %p35 = scmp.eq.s32.totalorder %s16, 0
      %p36 = por %p34, %p35
      %p37 = scmp.ne.s32.totalorder %s26, %s29
      %p38 = scmp.eq.s32.totalorder %s21, 1
      %p39 = por %p37, %p38
      %p40 = scmp.ne.s32.totalorder %s29, %s30
      %p41 = scmp.eq.s32.totalorder %s21, 0
      %p42 = por %p40, %p41
      %p43 = scmp.ne.s32.totalorder %s29, %s30
      %p44 = scmp.eq.s32.totalorder %s22, 1
      %p45 = por %p43, %p44
      %p47 = scmp.ne.s32.totalorder %s30, %s46
      %p48 = scmp.eq.s32.totalorder %s22, 0
      %p49 = por %p47, %p48
      %s51 = sadd.s32 %s50, 1
      %p54 = scmp.eq.s32.totalorder %s16, 1
      %p55 = scmp.ne.s32.totalorder %s50, %s52
      %p56 = scmp.eq.s32.totalorder %s16, 0
      %p57 = por %p55, %p56
      %p58 = scmp.ne.s32.totalorder %s50, %s52
      %p59 = scmp.eq.s32.totalorder %s21, 1
      %p60 = por %p58, %p59
      %p61 = scmp.ne.s32.totalorder %s52, %s53
      %p62 = scmp.eq.s32.totalorder %s21, 0
      %p63 = por %p61, %p62
      %p64 = scmp.ne.s32.totalorder %s52, %s53
      %p65 = scmp.eq.s32.totalorder %s22, 1
      %p66 = por %p64, %p65
      %p68 = scmp.ne.s32.totalorder %s53, %s67
      %p69 = scmp.eq.s32.totalorder %s22, 0
      %p70 = por %p68, %p69
      %s72 = sadd.s32 %s71, 1
      %p75 = scmp.eq.s32.totalorder %s16, 1
      %p76 = scmp.ne.s32.totalorder %s71, %s73
      %p77 = scmp.eq.s32.totalorder %s16, 0
      %p78 = por %p76, %p77
      %p79 = scmp.ne.s32.totalorder %s71, %s73
      %p80 = scmp.eq.s32.totalorder %s21, 1
      %p81 = por %p79, %p80
      %p82 = scmp.ne.s32.totalorder %s73, %s74
      %p83 = scmp.eq.s32.totalorder %s21, 0
      %p84 = por %p82, %p83
      %p85 = scmp.ne.s32.totalorder %s73, %s74
      %p86 = scmp.eq.s32.totalorder %s22, 1
      %p87 = por %p85, %p86
      %p89 = scmp.ne.s32.totalorder %s74, %s88
      %p90 = scmp.eq.s32.totalorder %s22, 0
      %p91 = por %p89, %p90
      %s93 = sadd.s32 %s92, 1
      %p96 = scmp.eq.s32.totalorder %s16, 1
      %p97 = scmp.ne.s32.totalorder %s92, %s94
      %p98 = scmp.eq.s32.totalorder %s16, 0
      %p99 = por %p97, %p98
      %p100 = scmp.ne.s32.totalorder %s92, %s94
      %p101 = scmp.eq.s32.totalorder %s21, 1
      %p102 = por %p100, %p101
      %p103 = scmp.ne.s32.totalorder %s94, %s95
      %p104 = scmp.eq.s32.totalorder %s21, 0
      %p105 = por %p103, %p104
      %p106 = scmp.ne.s32.totalorder %s94, %s95
      %p107 = scmp.eq.s32.totalorder %s22, 1
      %p108 = por %p106, %p107
      %p110 = scmp.ne.s32.totalorder %s95, %s109
      %p111 = scmp.eq.s32.totalorder %s22, 0
      %p112 = por %p110, %p111
      %s114 = sadd.s32 %s113, 1
      %p117 = scmp.eq.s32.totalorder %s16, 1
      %p118 = scmp.ne.s32.totalorder %s113, %s115
      %p119 = scmp.eq.s32.totalorder %s16, 0
      %p120 = por %p118, %p119
      %p121 = scmp.ne.s32.totalorder %s113, %s115
      %p122 = scmp.eq.s32.totalorder %s21, 1
      %p123 = por %p121, %p122
      %p124 = scmp.ne.s32.totalorder %s115, %s116
      %p125 = scmp.eq.s32.totalorder %s21, 0
      %p126 = por %p124, %p125
      %p127 = scmp.ne.s32.totalorder %s115, %s116
      %p128 = scmp.eq.s32.totalorder %s22, 1
      %p129 = por %p127, %p128
      %p131 = scmp.ne.s32.totalorder %s116, %s130
      %p132 = scmp.eq.s32.totalorder %s22, 0
      %p133 = por %p131, %p132
      %s135 = sadd.s32 %s134, 1
      %p138 = scmp.eq.s32.totalorder %s16, 1
      %p139 = scmp.ne.s32.totalorder %s134, %s136
      %p140 = scmp.eq.s32.totalorder %s16, 0
      %p141 = por %p139, %p140
      %p142 = scmp.ne.s32.totalorder %s134, %s136
      %p143 = scmp.eq.s32.totalorder %s21, 1
      %p144 = por %p142, %p143
      %p145 = scmp.ne.s32.totalorder %s136, %s137
      %p146 = scmp.eq.s32.totalorder %s21, 0
      %p147 = por %p145, %p146
      %p148 = scmp.ne.s32.totalorder %s136, %s137
      %p149 = scmp.eq.s32.totalorder %s22, 1
      %p150 = por %p148, %p149
      %p152 = scmp.ne.s32.totalorder %s137, %s151
      %p153 = scmp.eq.s32.totalorder %s22, 0
      %p154 = por %p152, %p153
      %s156 = sadd.s32 %s155, 1
      %p159 = scmp.eq.s32.totalorder %s16, 1
      %p160 = scmp.ne.s32.totalorder %s155, %s157
      %p161 = scmp.eq.s32.totalorder %s16, 0
      %p162 = por %p160, %p161
      %p163 = scmp.ne.s32.totalorder %s155, %s157
      %p164 = scmp.eq.s32.totalorder %s21, 1
      %p165 = por %p163, %p164
      %p166 = scmp.ne.s32.totalorder %s157, %s158
      %p167 = scmp.eq.s32.totalorder %s21, 0
      %p168 = por %p166, %p167
      %p169 = scmp.ne.s32.totalorder %s157, %s158
      %p170 = scmp.eq.s32.totalorder %s22, 1
      %p171 = por %p169, %p170
      %p173 = scmp.ne.s32.totalorder %s158, %s172
      %p174 = scmp.eq.s32.totalorder %s22, 0
      %p175 = por %p173, %p174
      %s176 = ssub.s32 %s16, %s23
      %p177 = scmp.eq.s32.totalorder %s176, 0
      %s179 = sadd.s32 %s178, 1
      %s180 = scalar_select %p177, %s178, %s179
      %p183 = pneg %p177
      %p184 = scmp.eq.s32.totalorder %s16, 1
      %p185 = por %p183, %p184
      %p186 = scmp.ne.s32.totalorder %s178, %s181
      %p187 = scmp.eq.s32.totalorder %s16, 0
      %p188 = por %p186, %p187
      %p189 = scmp.ne.s32.totalorder %s178, %s181
      %p190 = scmp.eq.s32.totalorder %s21, 1
      %p191 = por %p189, %p190
      %p192 = scmp.ne.s32.totalorder %s181, %s182
      %p193 = scmp.eq.s32.totalorder %s21, 0
      %p194 = por %p192, %p193
      %p195 = scmp.ne.s32.totalorder %s181, %s182
      %p196 = scmp.eq.s32.totalorder %s22, 1
      %p197 = por %p195, %p196
      %p199 = scmp.ne.s32.totalorder %s182, %s198
      %p200 = scmp.eq.s32.totalorder %s22, 0
      %p201 = por %p199, %p200
      %p202 = scmp.le.s32.totalorder 1, %s16
      %p203 = scmp.lt.s32.totalorder %s16, 3
      %p204 = pnand %p202, %p203
      %p205 = pneg %p204
      // Predicated region
      $region9: #{tpu_custom_call.1} parent=5 // pred_check
        _
      $region10: #{tpu_custom_call.1} parent=5 // pred_check_branch
        %207 = sbr.rel (%p204) target = $region12
      $region11: #{tpu_custom_call.1} parent=5 // pred_region
        %s208 = ssub.s32 %s16, 1
        // Predicated region
        $region13: #{tpu_custom_call.1} parent=11 // pred_check
          %p209 = pneg %p63
        $region14: #{tpu_custom_call.1} parent=11 // pred_check_branch
          %211 = sbr.rel (%p209) target = $region16
        $region15: #{tpu_custom_call.1} parent=11 // pred_region
          _
        $region16: #{tpu_custom_call.1} parent=11 // pred_fallthru
          _
        // Predicated region
        $region17: #{tpu_custom_call.1} parent=11 // pred_check
          %p212 = pneg %p84
        $region18: #{tpu_custom_call.1} parent=11 // pred_check_branch
          %214 = sbr.rel (%p212) target = $region20
        $region19: #{tpu_custom_call.1} parent=11 // pred_region
          _
        $region20: #{tpu_custom_call.1} parent=11 // pred_fallthru
          _
        // Predicated region
        $region21: #{tpu_custom_call.1} parent=11 // pred_check
          %p215 = pneg %p105
        $region22: #{tpu_custom_call.1} parent=11 // pred_check_branch
          %217 = sbr.rel (%p215) target = $region24
        $region23: #{tpu_custom_call.1} parent=11 // pred_region
          %s219 = ssub.s32 1024, 1024
          %220 = vsyncadd [#allocation4], %s219
          %s221 = sshll.u32 [#allocation3], 4
          %s222 = int_to_ptr.vmem [resolvable:$true] %s221
          %227 = dma.hbm_to_vmem [thread:$0]  %s3, 1024, %s222, [#allocation4], 64, 64, 4
        $region24: #{tpu_custom_call.1} parent=11 // pred_fallthru
          _
        // Predicated region
        $region25: #{tpu_custom_call.1} parent=11 // pred_check
          %p228 = pneg %p126
        $region26: #{tpu_custom_call.1} parent=11 // pred_check_branch
          %230 = sbr.rel (%p228) target = $region28
        $region27: #{tpu_custom_call.1} parent=11 // pred_region
          _
        $region28: #{tpu_custom_call.1} parent=11 // pred_fallthru
          _
        // Predicated region
        $region29: #{tpu_custom_call.1} parent=11 // pred_check
          %p231 = pneg %p147
        $region30: #{tpu_custom_call.1} parent=11 // pred_check_branch
          %233 = sbr.rel (%p231) target = $region32
        $region31: #{tpu_custom_call.1} parent=11 // pred_region
          _
        $region32: #{tpu_custom_call.1} parent=11 // pred_fallthru
          _
        // Predicated region
        $region33: #{tpu_custom_call.1} parent=11 // pred_check
          %p234 = pneg %p168
        $region34: #{tpu_custom_call.1} parent=11 // pred_check_branch
          %236 = sbr.rel (%p234) target = $region36
        $region35: #{tpu_custom_call.1} parent=11 // pred_region
          _
        $region36: #{tpu_custom_call.1} parent=11 // pred_fallthru
          _
      $region12: #{tpu_custom_call.1} parent=5 // pred_fallthru
        _
      %p237 = scmp.lt.s32.totalorder %s16, 2
      // Predicated region
      $region37: #{tpu_custom_call.1} parent=5 // pred_check
        %p238 = pneg %p237
      $region38: #{tpu_custom_call.1} parent=5 // pred_check_branch
        %240 = sbr.rel (%p238) target = $region40
      $region39: #{tpu_custom_call.1} parent=5 // pred_region
        // Predicated region
        $region41: #{tpu_custom_call.1} parent=39 // pred_check
          %p241 = pneg %p36
        $region42: #{tpu_custom_call.1} parent=39 // pred_check_branch
          %243 = sbr.rel (%p241) target = $region44
        $region43: #{tpu_custom_call.1} parent=39 // pred_region
          %s244 = smul.u32 2, %s16
          %s245 = ssub.s32 3, %s244
          %p246 = scmp.lt.s32.totalorder %s245, 2
          %s247 = scalar_select %p246, %s245, 2
          %s248 = smul.u32 128, %s247
          %p249 = scmp.lt.s32.totalorder %s244, 2
          %s250 = scalar_select %p249, %s244, 2
          %s251 = smul.addr %s250, 8
          %s252 = scalar_lea.vmem %s0, %s251
          %s253 = smul.u32 2, %s16
          %s254 = ssub.s32 3, %s253
          %p255 = scmp.lt.s32.totalorder %s254, 2
          %s256 = scalar_select %p255, %s254, 2
          %s257 = smul.u32 128, %s256
        $region44: #{tpu_custom_call.1} parent=39 // pred_fallthru
          _
      $region40: #{tpu_custom_call.1} parent=5 // pred_fallthru
        _
      %p258 = scmp.le.s32.totalorder 1, %s16
      %p259 = scmp.lt.s32.totalorder %s16, 3
      %p260 = pnand %p258, %p259
      %p261 = pneg %p260
      // Predicated region
      $region45: #{tpu_custom_call.1} parent=5 // pred_check
        _
      $region46: #{tpu_custom_call.1} parent=5 // pred_check_branch
        %263 = sbr.rel (%p260) target = $region48
      $region47: #{tpu_custom_call.1} parent=5 // pred_region
        %s264 = ssub.s32 %s16, 1
        // Predicated region
        $region49: #{tpu_custom_call.1} parent=47 // pred_check
          %p265 = pneg %p105
        $region50: #{tpu_custom_call.1} parent=47 // pred_check_branch
          %267 = sbr.rel (%p265) target = $region52
        $region51: #{tpu_custom_call.1} parent=47 // pred_region
          %268 = dma.done [#allocation4], 1024
        $region52: #{tpu_custom_call.1} parent=47 // pred_fallthru
          _
        %s269 = smul.u32 2, %s21
        %s270 = ssub.s32 3, %s269
        %p271 = scmp.lt.s32.totalorder %s270, 2
        %s272 = scalar_select %p271, %s270, 2
        %s273 = smul.u32 128, %s272
        %p274 = scmp.lt.s32.totalorder %s269, 2
        %s275 = scalar_select %p274, %s269, 2
        %s276 = smul.addr %s275, 8
        %s277 = scalar_lea.vmem %s0, %s276
        %p278 = pneg %p42
        %p279 = pneg %p39
        %p280 = pneg %p63
        %p281 = pneg %p60
        %p282 = pneg %p84
        %p283 = pneg %p81
        %p284 = pneg %p105
        %p285 = pneg %p102
        %p286 = pneg %p126
        %p287 = pneg %p123
        %p288 = pneg %p147
        %p289 = pneg %p144
        %p290 = pneg %p168
        %p291 = pneg %p165
        %p292 = pneg %p194
        %p293 = pneg %p191
        %s294 = sand.u32 %s181, 1
        %s295 = sand.u32 %s181, 1
        %s296 = smul.addr %s295, 16
        %s297 = scalar_lea.vmem [#allocation5], %s296
        %s298 = smul.u32 2, %s21
        %s299 = ssub.s32 3, %s298
        %p300 = scmp.lt.s32.totalorder %s299, 2
        %s301 = scalar_select %p300, %s299, 2
        %s302 = smul.u32 128, %s301
        %p303 = scmp.lt.s32.totalorder %s298, 2
        %s304 = scalar_select %p303, %s298, 2
        %s305 = smul.addr %s304, 8
        %s306 = scalar_lea.vmem %s0, %s305
        %s307 = smul.u32 2, %s21
        %s308 = ssub.s32 3, %s307
        %p309 = scmp.lt.s32.totalorder %s308, 2
        %s310 = scalar_select %p309, %s308, 2
        %s311 = smul.u32 128, %s310
        %s312 = smul.u32 2, %s21
        %s313 = ssub.s32 3, %s312
        %p314 = scmp.lt.s32.totalorder %s313, 2
        %s315 = scalar_select %p314, %s313, 2
        %s316 = smul.u32 128, %s315
        %v318 = vld [vmem:[%s306] sm:$0xff]
        %v319 = vld [vmem:[%s306 + $0x8] sm:$0xff]
        %v320 = vld [vmem:[%s1] sm:$0x1]
        %v321 = vunpack.c.l.bf16 %v320
        %323 = vset.pattern.permute.xlu0 0
        %324 = vperm.xlu0 %323, %v318
        %v325 = vpop.permute.xlu0 %324
        %328 = vset.pattern.permute.xlu0 0
        %329 = vperm.xlu0 %328, %v319
        %v330 = vpop.permute.xlu0 %329
        %v332 = vlaneseq
        %v333 = vshrl.u32 %v332, 7
        %v334 = vsub.s32 0, %v333
        %v335 = vrot.slane %v321, %v334
        %v336 = vmul.f32 %v325, %v335
        %v337 = vmul.f32 %v330, %v335
        %338 = vset.pattern.permute.xlu0 1
        %339 = vperm.xlu0 %338, %v318
        %v340 = vpop.permute.xlu0 %339
        %342 = vset.pattern.permute.xlu0 1
        %343 = vperm.xlu0 %342, %v319
        %v344 = vpop.permute.xlu0 %343
        %v346 = vlaneseq
        %v347 = vshrl.u32 %v346, 7
        %v348 = vsub.s32 1, %v347
        %v349 = vrot.slane %v321, %v348
        %v350 = vmul.f32 %v340, %v349
        %v351 = vmul.f32 %v344, %v349
        %v352 = vadd.f32 %v336, %v350
        %v353 = vadd.f32 %v337, %v351
        %v354 = vld [vmem:[%s1] sm:$0x2]
        %v355 = vunpack.c.l.bf16 %v354
        %356 = vset.pattern.permute.xlu0 2
        %357 = vperm.xlu0 %356, %v318
        %v358 = vpop.permute.xlu0 %357
        %360 = vset.pattern.permute.xlu0 2
        %361 = vperm.xlu0 %360, %v319
        %v362 = vpop.permute.xlu0 %361
        %v364 = vlaneseq
        %v365 = vshrl.u32 %v364, 7
        %v366 = vsub.s32 2, %v365
        %v367 = vrot.slane %v355, %v366
        %v368 = vmul.f32 %v358, %v367
        %v369 = vmul.f32 %v362, %v367
        %v370 = vadd.f32 %v352, %v368
        %v371 = vadd.f32 %v353, %v369
        %372 = vset.pattern.permute.xlu0 3
        %373 = vperm.xlu0 %372, %v318
        %v374 = vpop.permute.xlu0 %373
        %376 = vset.pattern.permute.xlu0 3
        %377 = vperm.xlu0 %376, %v319
        %v378 = vpop.permute.xlu0 %377
        %v380 = vlaneseq
        %v381 = vshrl.u32 %v380, 7
        %v382 = vsub.s32 3, %v381
        %v383 = vrot.slane %v355, %v382
        %v384 = vmul.f32 %v374, %v383
        %v385 = vmul.f32 %v378, %v383
        %v386 = vadd.f32 %v370, %v384
        %v387 = vadd.f32 %v371, %v385
        %v388 = vld [vmem:[%s2] sm:$0x1]
        %v389 = vunpack.c.l.bf16 %v388
        %v390 = vlaneseq
        %v391 = vshrl.u32 %v390, 7
        %v392 = vsub.s32 0, %v391
        %v393 = vrot.slane %v389, %v392
        %v394 = vadd.f32 %v386, %v393
        %v395 = vadd.f32 %v387, %v393
        %v396 = vmax.f32 %v394, 0.0
        %v397 = vmax.f32 %v395, 0.0
        %v398 = vpack.c.bf16 %v397, %v396
        %v399 = vld [vmem:[#allocation3] sm:$0xf]
        %v400 = vld [vmem:[#allocation3 + $0x4] sm:$0xf]
        %v401 = vld [vmem:[#allocation3 + $0x8] sm:$0xf]
        %v402 = vld [vmem:[#allocation3 + $0xc] sm:$0xf]
        %v403 = vld [vmem:[#allocation3 + $0x10] sm:$0xf]
        %v404 = vld [vmem:[#allocation3 + $0x14] sm:$0xf]
        %v405 = vld [vmem:[#allocation3 + $0x18] sm:$0xf]
        %v406 = vld [vmem:[#allocation3 + $0x1c] sm:$0xf]
        %v407 = vld [vmem:[#allocation3 + $0x20] sm:$0xf]
        %v408 = vld [vmem:[#allocation3 + $0x24] sm:$0xf]
        %v409 = vld [vmem:[#allocation3 + $0x28] sm:$0xf]
        %v410 = vld [vmem:[#allocation3 + $0x2c] sm:$0xf]
        %v411 = vld [vmem:[#allocation3 + $0x30] sm:$0xf]
        %v412 = vld [vmem:[#allocation3 + $0x34] sm:$0xf]
        %v413 = vld [vmem:[#allocation3 + $0x38] sm:$0xf]
        %v414 = vld [vmem:[#allocation3 + $0x3c] sm:$0xf]
        %v415 = vld [vmem:[%s4] sm:$0x1]
        %v416 = vunpack.c.l.bf16 %v415
        %v417 = vlaneseq
        %v418 = vshrl.u32 %v417, 7
        %v419 = vsub.s32 0, %v418
        %v420 = vrot.slane %v416, %v419
        %v437 = vunpack.c.l.b16 %v399
        %v438 = vunpack.c.l.b16 %v400
        %v439 = vunpack.c.l.b16 %v401
        %v440 = vunpack.c.l.b16 %v402
        %v441 = vunpack.c.l.b16 %v403
        %v442 = vunpack.c.l.b16 %v404
        %v443 = vunpack.c.l.b16 %v405
        %v444 = vunpack.c.l.b16 %v406
        %v445 = vunpack.c.l.b16 %v407
        %v446 = vunpack.c.l.b16 %v408
        %v447 = vunpack.c.l.b16 %v409
        %v448 = vunpack.c.l.b16 %v410
        %v449 = vunpack.c.l.b16 %v411
        %v450 = vunpack.c.l.b16 %v412
        %v451 = vunpack.c.l.b16 %v413
        %v452 = vunpack.c.l.b16 %v414
        %v453 = vpack.c.b16 %v438, %v437
        %v454 = vpack.c.b16 %v440, %v439
        %v455 = vpack.c.b16 %v442, %v441
        %v456 = vpack.c.b16 %v444, %v443
        %v457 = vpack.c.b16 %v446, %v445
        %v458 = vpack.c.b16 %v448, %v447
        %v459 = vpack.c.b16 %v450, %v449
        %v460 = vpack.c.b16 %v452, %v451
        %469 = vmatprep.subr.bf16.mxu0 0
        %470 = vmatpush1.bf16.msra.mxu0 %v453
        %471 = vmatprep.subr.bf16.mxu0 0
        %472 = vmatpush1.bf16.msra.mxu0 %v454
        %473 = vmatprep.subr.bf16.mxu0 0
        %474 = vmatpush1.bf16.msra.mxu0 %v455
        %475 = vmatprep.subr.bf16.mxu0 0
        %476 = vmatpush1.bf16.msra.mxu0 %v456
        %477 = vmatprep.subr.bf16.mxu0 0
        %478 = vmatpush1.bf16.msra.mxu0 %v457
        %479 = vmatprep.subr.bf16.mxu0 0
        %480 = vmatpush1.bf16.msra.mxu0 %v458
        %481 = vmatprep.subr.bf16.mxu0 0
        %482 = vmatpush1.bf16.msra.mxu0 %v459
        %483 = vmatprep.subr.bf16.mxu0 0
        %484 = vmatpush1.bf16.msra.mxu0 %v460
        %485 = vmatprep.subr.bf16.mxu0 0
        %486 = vmatpush1.bf16.msra.mxu0 0
        %487 = vmatprep.subr.bf16.mxu0 0
        %488 = vmatpush1.bf16.msra.mxu0 0
        %489 = vmatprep.subr.bf16.mxu0 0
        %490 = vmatpush1.bf16.msra.mxu0 0
        %491 = vmatprep.subr.bf16.mxu0 0
        %492 = vmatpush1.bf16.msra.mxu0 0
        %493 = vmatprep.subr.bf16.mxu0 0
        %494 = vmatpush1.bf16.msra.mxu0 0
        %495 = vmatprep.subr.bf16.mxu0 0
        %496 = vmatpush1.bf16.msra.mxu0 0
        %497 = vmatprep.subr.bf16.mxu0 0
        %498 = vmatpush1.bf16.msra.mxu0 0
        %499 = vmatprep.subr.bf16.mxu0 0
        %500 = vmatpush1.bf16.msra.mxu0 0
        %501 = vmatprep.mubr.bf16.mxu0 0
        %502 = vmatmul.mubr.bf16.gmra.mrb[0].mxu0 %v398
        %v503 = vpop.f32.mrb[0].mxu0
        %v504 = vadd.f32 %v420, %v503
        %v505 = vpop.f32.mrb[0].mxu0
        %v506 = vpop.f32.mrb[0].mxu0
        %v507 = vadd.f32 %v420, %v506
        %v508 = vpop.f32.mrb[0].mxu0
        %509 = vdwg.mxu0
        %v510 = vmax.f32 %v504, 0.0
        %v511 = vmax.f32 %v507, 0.0
        %v512 = vld [vmem:[%s5] sm:$0x1]
        %v513 = vunpack.c.l.bf16 %v512
        %v514 = vlaneseq
        %v515 = vshrl.u32 %v514, 7
        %v516 = vsub.s32 0, %v515
        %v517 = vrot.slane %v513, %v516
        %v518 = vmul.f32 %v510, %v517
        %v519 = vmul.f32 %v511, %v517
        %520 = vadd.xlane.f32.xlu0 %v518
        %v521 = vpop.xlane.xlu0 %520
        %522 = vadd.xlane.f32.xlu0 %v519
        %v523 = vpop.xlane.xlu0 %522
        %v524 = vld [vmem:[#allocation2] sm:$0x1]
        %v525 = vunpack.c.l.bf16 %v524
        %v526 = vlaneseq
        %v527 = vshrl.u32 %v526, 7
        %v528 = vsub.s32 0, %v527
        %v529 = vrot.slane %v525, %v528
        %v530 = vadd.f32 %v521, %v529
        %v531 = vadd.f32 %v523, %v529
        %vm532 = vcmask 7168
        %533 = vst.msk [vmem:[%s297] sm:$0xff] %vm532, %v530
        %534 = vst.msk [vmem:[%s297 + $0x8] sm:$0xff] %vm532, %v531
        %s535 = sand.u32 %s181, 1
        %s536 = sand.u32 %s181, 1
        %s537 = smul.addr %s536, 16
        %s538 = scalar_lea.vmem [#allocation5], %s537
        // Predicated region
        $region53: #{tpu_custom_call.1} parent=47 // pred_check
          %p539 = pneg %p191
        $region54: #{tpu_custom_call.1} parent=47 // pred_check_branch
          %541 = sbr.rel (%p539) target = $region56
        $region55: #{tpu_custom_call.1} parent=47 // pred_region
          %s542 = smul.u32 2, %s21
          %s543 = ssub.s32 3, %s542
          %p544 = scmp.lt.s32.totalorder %s543, 2
          %s545 = scalar_select %p544, %s543, 2
          %s546 = smul.u32 128, %s545
          %p547 = scmp.ne.s32.totalorder 0, %s546
          %s548 = smul.addr %s542, 8
          %s549 = scalar_lea.vmem %s7, %s548
          // Predicated region
          $region57: #{tpu_custom_call.1} parent=55 // pred_check
            %p550 = pneg %p547
          $region58: #{tpu_custom_call.1} parent=55 // pred_check_branch
            %552 = sbr.rel (%p550) target = $region60
          $region59: #{tpu_custom_call.1} parent=55 // pred_region
            // Predicated region
            $region61: #{tpu_custom_call.1} parent=59 // pred_check
              _
            $region62: #{tpu_custom_call.1} parent=59 // pred_check_branch
              %554 = sbr.rel (0) target = $region64
            $region63: #{tpu_custom_call.1} parent=59 // pred_region
              // Predicated region
              $region83: #{tpu_custom_call.1} parent=63 // pred_check
                _
              $region84: #{tpu_custom_call.1} parent=63 // pred_check_branch
                %605 = sbr.rel (0) target = $region86
              $region85: #{tpu_custom_call.1} parent=63 // pred_region
                %s606 = sshrl.u32 %s545, 1
                // While loop
                $region87: #{tpu_custom_call.1} parent=85 // loop_pre_header
                  _
                $region88: #{tpu_custom_call.1} parent=85 // loop_header
                  %s608 = sphi 0, %s610
                  %p609 = scmp.ge.s32.totalorder %s608, %s606
                  %s613 = sphi 0, %s622
                  %s614 = sphi %s538, %s625
                  %s615 = sphi %s549, %s626
                $region89: #{tpu_custom_call.1} parent=85 // loop_header_branch
                  %612 = sbr.rel (%p609) target = $region93
                $region90: #{tpu_custom_call.1} parent=85 // loop_body
                  %v616 = vld [vmem:[%s614] sm:$0xff]
                  %617 = vst [vmem:[%s615] sm:$0xff] %v616
                  %v618 = vld [vmem:[%s614 + $0x8] sm:$0xff]
                  %619 = vst [vmem:[%s615 + $0x8] sm:$0xff] %v618
                  %s620 = sadd.s32 1, %s613
                  %p621 = scmp.ge.s32.totalorder %s620, %s606
                  %s622 = scalar_select %p621, 0, %s620
                  %s623 = smul.u32 %s622, 16
                  %s624 = smul.u32 %s622, 16
                  %s625 = scalar_lea.vmem %s538, %s623 [#allocation5]
                  %s626 = scalar_lea.vmem %s549, %s624
                $region91: #{tpu_custom_call.1} parent=85 // loop_footer
                  %s610 = sadd.s32 %s608, 1
                $region92: #{tpu_custom_call.1} parent=85 // loop_footer_branch
                  %607 = sbr.rel target = $region88
                $region93: #{tpu_custom_call.1} parent=85 // loop_exit
                  _
                %s627 = sshrl.u32 %s545, 1
                %s628 = sand.u32 %s545, 1
                %s629 = smul.u32 %s627, 2
                %s630 = smul.u32 8, %s629
                %s631 = scalar_lea.vmem %s538, %s630 [#allocation5]
                %s632 = smul.u32 8, %s629
                %s633 = scalar_lea.vmem %s549, %s632
                // While loop
                $region94: #{tpu_custom_call.1} parent=85 // loop_pre_header
                  _
                $region95: #{tpu_custom_call.1} parent=85 // loop_header
                  %s635 = sphi 0, %s637
                  %p636 = scmp.ge.s32.totalorder %s635, %s628
                  %s640 = sphi 0, %s647
                  %s641 = sphi %s631, %s650
                  %s642 = sphi %s633, %s651
                $region96: #{tpu_custom_call.1} parent=85 // loop_header_branch
                  %639 = sbr.rel (%p636) target = $region100
                $region97: #{tpu_custom_call.1} parent=85 // loop_body
                  %v643 = vld [vmem:[%s641] sm:$0xff]
                  %644 = vst [vmem:[%s642] sm:$0xff] %v643
                  %s645 = sadd.s32 1, %s640
                  %p646 = scmp.ge.s32.totalorder %s645, %s628
                  %s647 = scalar_select %p646, 0, %s645
                  %s648 = smul.u32 %s647, 8
                  %s649 = smul.u32 %s647, 8
                  %s650 = scalar_lea.vmem %s631, %s648 [#allocation5]
                  %s651 = scalar_lea.vmem %s633, %s649
                $region98: #{tpu_custom_call.1} parent=85 // loop_footer
                  %s637 = sadd.s32 %s635, 1
                $region99: #{tpu_custom_call.1} parent=85 // loop_footer_branch
                  %634 = sbr.rel target = $region95
                $region100: #{tpu_custom_call.1} parent=85 // loop_exit
                  _
              $region86: #{tpu_custom_call.1} parent=63 // pred_fallthru
                _
              // Predicated region
              $region101: #{tpu_custom_call.1} parent=63 // pred_check
                _
              $region102: #{tpu_custom_call.1} parent=63 // pred_check_branch
                %653 = sbr.rel target = $region104
              $region103: #{tpu_custom_call.1} parent=63 // pred_region
                _
              $region104: #{tpu_custom_call.1} parent=63 // pred_fallthru
                _
            $region64: #{tpu_custom_call.1} parent=59 // pred_fallthru
              _
            // Predicated region
            $region65: #{tpu_custom_call.1} parent=59 // pred_check
              _
            $region66: #{tpu_custom_call.1} parent=59 // pred_check_branch
              %556 = sbr.rel target = $region68
            $region67: #{tpu_custom_call.1} parent=59 // pred_region
              %s558 = sshrl.u32 %s545, 1
              // While loop
              $region69: #{tpu_custom_call.1} parent=67 // loop_pre_header
                _
              $region70: #{tpu_custom_call.1} parent=67 // loop_header
                %s560 = sphi 0, %s562
                %p561 = scmp.ge.s32.totalorder %s560, %s558
                %s565 = sphi 0, %s574
                %s566 = sphi %s538, %s577
                %s567 = sphi %s549, %s578
              $region71: #{tpu_custom_call.1} parent=67 // loop_header_branch
                %564 = sbr.rel (%p561) target = $region75
              $region72: #{tpu_custom_call.1} parent=67 // loop_body
                %v568 = vld [vmem:[%s566] sm:$0xff]
                %569 = vst [vmem:[%s567] sm:$0xff] %v568
                %v570 = vld [vmem:[%s566 + $0x8] sm:$0xff]
                %571 = vst [vmem:[%s567 + $0x8] sm:$0xff] %v570
                %s572 = sadd.s32 1, %s565
                %p573 = scmp.ge.s32.totalorder %s572, %s558
                %s574 = scalar_select %p573, 0, %s572
                %s575 = smul.u32 %s574, 16
                %s576 = smul.u32 %s574, 16
                %s577 = scalar_lea.vmem %s538, %s575 [#allocation5]
                %s578 = scalar_lea.vmem %s549, %s576
              $region73: #{tpu_custom_call.1} parent=67 // loop_footer
                %s562 = sadd.s32 %s560, 1
              $region74: #{tpu_custom_call.1} parent=67 // loop_footer_branch
                %559 = sbr.rel target = $region70
              $region75: #{tpu_custom_call.1} parent=67 // loop_exit
                _
              %s579 = sshrl.u32 %s545, 1
              %s580 = sand.u32 %s545, 1
              %s581 = smul.u32 %s579, 2
              %s582 = smul.u32 8, %s581
              %s583 = scalar_lea.vmem %s538, %s582 [#allocation5]
              %s584 = smul.u32 8, %s581
              %s585 = scalar_lea.vmem %s549, %s584
              // While loop
              $region76: #{tpu_custom_call.1} parent=67 // loop_pre_header
                _
              $region77: #{tpu_custom_call.1} parent=67 // loop_header
                %s587 = sphi 0, %s589
                %p588 = scmp.ge.s32.totalorder %s587, %s580
                %s592 = sphi 0, %s599
                %s593 = sphi %s583, %s602
                %s594 = sphi %s585, %s603
              $region78: #{tpu_custom_call.1} parent=67 // loop_header_branch
                %591 = sbr.rel (%p588) target = $region82
              $region79: #{tpu_custom_call.1} parent=67 // loop_body
                %v595 = vld [vmem:[%s593] sm:$0xff]
                %596 = vst [vmem:[%s594] sm:$0xff] %v595
                %s597 = sadd.s32 1, %s592
                %p598 = scmp.ge.s32.totalorder %s597, %s580
                %s599 = scalar_select %p598, 0, %s597
                %s600 = smul.u32 %s599, 8
                %s601 = smul.u32 %s599, 8
                %s602 = scalar_lea.vmem %s583, %s600 [#allocation5]
                %s603 = scalar_lea.vmem %s585, %s601
              $region80: #{tpu_custom_call.1} parent=67 // loop_footer
                %s589 = sadd.s32 %s587, 1
              $region81: #{tpu_custom_call.1} parent=67 // loop_footer_branch
                %586 = sbr.rel target = $region77
              $region82: #{tpu_custom_call.1} parent=67 // loop_exit
                _
            $region68: #{tpu_custom_call.1} parent=59 // pred_fallthru
              _
          $region60: #{tpu_custom_call.1} parent=55 // pred_fallthru
            _
          %654 = vnop
        $region56: #{tpu_custom_call.1} parent=47 // pred_fallthru
          _
      $region48: #{tpu_custom_call.1} parent=5 // pred_fallthru
        _
      %p655 = scmp.le.s32.totalorder 2, %s16
      // Predicated region
      $region105: #{tpu_custom_call.1} parent=5 // pred_check
        %p656 = pneg %p655
      $region106: #{tpu_custom_call.1} parent=5 // pred_check_branch
        %658 = sbr.rel (%p656) target = $region108
      $region107: #{tpu_custom_call.1} parent=5 // pred_region
        %s659 = ssub.s32 %s16, 2
        // Predicated region
        $region109: #{tpu_custom_call.1} parent=107 // pred_check
          %p660 = pneg %p197
        $region110: #{tpu_custom_call.1} parent=107 // pred_check_branch
          %662 = sbr.rel (%p660) target = $region112
        $region111: #{tpu_custom_call.1} parent=107 // pred_region
          %s663 = sand.u32 %s182, 1
          %s664 = sand.u32 %s182, 1
          %s665 = smul.addr %s664, 16
          %s666 = scalar_lea.vmem [#allocation5], %s665
        $region112: #{tpu_custom_call.1} parent=107 // pred_fallthru
          _
      $region108: #{tpu_custom_call.1} parent=5 // pred_fallthru
        _
    $region6: #{tpu_custom_call.1} parent=1 // loop_footer
      %s20 = sadd.s32 1, %s16
    $region7: #{tpu_custom_call.1} parent=1 // loop_footer_branch
      %15 = sbr.rel target = $region3
    $region8: #{tpu_custom_call.1} parent=1 // loop_exit
      _
    %667 = vsyncpa [#allocation4], 1
    %s668 = scalar_lea.sflag [#allocation4], 1
    %669 = vsyncpa %s668, 1

</llo_original>
